<compile_context>
chip_gen: v6e
topology: v6e:2x2x1
jax: 0.10.0
libtpu: 0.0.40
codegen_flags: <defaults>
</compile_context>

<pallas_src>
import jax
import jax.numpy as jnp
from jax.experimental import pallas as pl
from jax.experimental.pallas import tpu as pltpu

LANE = 128     # TPU lane width (last-dim tiling unit)
SUBLANE = 8    # sublane tiling unit (second-to-last dim)


def _round_up(n, m):
    return ((n + m - 1) // m) * m


# ---------------------------------------------------------------------------
# Kernel
# ---------------------------------------------------------------------------
def vae_kernel(x_ref, w1_ref, b1_ref, wms_ref, bms_ref,
               wd1_ref, bd1_ref, wd2_ref, bd2_ref, eps_ref, out_ref):
    """Whole VAE forward on one (TILE_B, features) tile.

    encoder:  h        = relu(x @ W1 + b1)
              [mu|ls]  = h @ [Wmu|Wsig] + [bmu|bsig]     (fused projection)
              sigma    = exp(ls)
              z        = mu + sigma * eps                (eps ~ N(0,1), host-side)
    decoder:  d        = z @ Wd1 + bd1
              y        = d @ Wd2 + bd2
    Padded feature columns are exact zeros by construction (zero weight cols/rows,
    zero eps), so they contribute nothing and are sliced off by the wrapper.
    """
    x = x_ref[...]

    h = jnp.dot(x, w1_ref[...], preferred_element_type=jnp.float32) + b1_ref[...]
    h = jnp.maximum(h, 0.0)                                   # ReLU

    # Fused mu / log-sigma projection: one MXU pass instead of two narrow ones.
    ms = jnp.dot(h, wms_ref[...], preferred_element_type=jnp.float32) + bms_ref[...]
    bp = wms_ref.shape[1] // 2                                # lane-aligned split point
    mu = ms[:, :bp]
    sigma = jnp.exp(ms[:, bp:])

    z = mu + sigma * eps_ref[...]                             # reparameterization

    d = jnp.dot(z, wd1_ref[...], preferred_element_type=jnp.float32) + bd1_ref[...]
    y = jnp.dot(d, wd2_ref[...], preferred_element_type=jnp.float32) + bd2_ref[...]

    out_ref[...] = y.astype(out_ref.dtype)


# ---------------------------------------------------------------------------
# Parameter preparation (done once, outside the hot path)
# ---------------------------------------------------------------------------
def prepare_params(params):
    """Pad to lane-dense (multiple-of-128) shapes, fuse mu/sigma, biases -> (1, out).

    Input params are in (in, out) layout (see init_params).
    """
    w1, b1, wmu, bmu, wsig, bsig, wd1, bd1, wd2, bd2 = params
    input_size, hidden = w1.shape
    btl = wmu.shape[1]

    ip = _round_up(input_size, LANE)
    hp = _round_up(hidden, LANE)
    bp = _round_up(btl, LANE)

    def pad2(w, rows, cols):
        return jnp.pad(w, ((0, rows - w.shape[0]), (0, cols - w.shape[1])))

    def pad1(b, cols):
        return jnp.pad(b, (0, cols - b.shape[0]))[None, :]

    w1p, b1p = pad2(w1, ip, hp), pad1(b1, hp)
    wms = jnp.concatenate([pad2(wmu, hp, bp), pad2(wsig, hp, bp)], axis=1)   # (hp, 2*bp)
    bms = jnp.concatenate([pad1(bmu, bp), pad1(bsig, bp)], axis=1)           # (1, 2*bp)
    wd1p, bd1p = pad2(wd1, bp, hp), pad1(bd1, hp)
    wd2p, bd2p = pad2(wd2, hp, ip), pad1(bd2, ip)

    # For v6e/v7x: cast the returned weights/biases to jnp.bfloat16 here; the kernel
    # keeps f32 accumulation and f32 exp/reparameterization.
    return (w1p, b1p, wms, bms, wd1p, bd1p, wd2p, bd2p)


# ---------------------------------------------------------------------------
# Wrapper
# ---------------------------------------------------------------------------
def vae_forward(x, eps, prepared, *, tile_b=256):
    """Runs the padded, batch-gridded kernel and slices the result back."""
    w1, b1, wms, bms, wd1, bd1, wd2, bd2 = prepared
    batch, input_size = x.shape
    ip, hp = w1.shape
    bp = wms.shape[1] // 2

    tile_b = min(tile_b, _round_up(batch, SUBLANE))
    padded_batch = _round_up(batch, tile_b)
    grid = (padded_batch // tile_b,)

    x_p = jnp.pad(x, ((0, padded_batch - batch), (0, ip - input_size)))
    eps_p = jnp.pad(eps, ((0, padded_batch - batch), (0, bp - eps.shape[1])))

    act_spec = pl.BlockSpec((tile_b, ip), lambda i: (i, 0))
    eps_spec = pl.BlockSpec((tile_b, bp), lambda i: (i, 0))
    out_spec = pl.BlockSpec((tile_b, ip), lambda i: (i, 0))

    def resident(arr):
        # Constant block index across the grid -> DMA'd once, stays in VMEM.
        return pl.BlockSpec(arr.shape, lambda i: (0, 0))

    out = pl.pallas_call(
        vae_kernel,
        out_shape=jax.ShapeDtypeStruct((padded_batch, ip), x.dtype),
        grid=grid,
        in_specs=[
            act_spec,
            resident(w1), resident(b1),
            resident(wms), resident(bms),
            resident(wd1), resident(bd1),
            resident(wd2), resident(bd2),
            eps_spec,
        ],
        out_specs=out_spec,
        compiler_params=pltpu.CompilerParams(
            dimension_semantics=("parallel",)),
    )(x_p, w1, b1, wms, bms, wd1, bd1, wd2, bd2, eps_p)

    return out[:batch, :input_size]


# ---------------------------------------------------------------------------
# Init (params stored directly in (in, out) layout -> no per-call transposes)
# ---------------------------------------------------------------------------
def init_params(key, input_size, btl_size, step):
    hidden = input_size - step * 1
    keys = jax.random.split(key, 10)

    def linear(kw, kb, fan_in, fan_out):
        # torch.nn.Linear default: U(-1/sqrt(fan_in), 1/sqrt(fan_in))
        bound = 1.0 / jnp.sqrt(jnp.float32(fan_in))
        w = jax.random.uniform(kw, (fan_in, fan_out), jnp.float32, -bound, bound)
        b = jax.random.uniform(kb, (fan_out,), jnp.float32, -bound, bound)
        return w, b

    w1, b1     = linear(keys[0], keys[1], input_size, hidden)   # linear1
    wmu, bmu   = linear(keys[2], keys[3], hidden, btl_size)     # mu_layer
    wsig, bsig = linear(keys[4], keys[5], hidden, btl_size)     # sigma_layer
    wd1, bd1   = linear(keys[6], keys[7], btl_size, hidden)     # decoder[0]
    wd2, bd2   = linear(keys[8], keys[9], hidden, input_size)   # decoder[1]

    return (w1, b1, wmu, bmu, wsig, bsig, wd1, bd1, wd2, bd2)


if __name__ == "__main__":
    # Shapes consistent with the module; batch sized so the grid actually iterates.
    batch = 512
    input_size = 32
    step = 8            # hidden = input_size - step = 24
    btl_size = 16

    key = jax.random.PRNGKey(0)
    k_x, k_p, k_eps = jax.random.split(key, 3)

    x = jax.random.normal(k_x, (batch, input_size), jnp.float32)
    params = init_params(k_p, input_size, btl_size, step)
    # TODO(synk): torch.distributions.Normal(0,1).sample is replaced by a deterministic
    # host-side jax.random.normal draw (could move in-kernel via pltpu.prng_* at scale).
    eps = jax.random.normal(k_eps, (batch, btl_size), jnp.float32)

    prepared = prepare_params(params)
    out = vae_forward(x, eps, prepared, tile_b=256)
    jax.block_until_ready(out)

    # Pure-JAX reference of the same math on the unpadded params.
    (w1, b1, wmu, bmu, wsig, bsig, wd1, bd1, wd2, bd2) = params
    h = jnp.maximum(x @ w1 + b1, 0.0)
    mu = h @ wmu + bmu
    sigma = jnp.exp(h @ wsig + bsig)
    z = mu + sigma * eps
    ref = (z @ wd1 + bd1) @ wd2 + bd2
    assert out.shape == ref.shape, f"shape mismatch {out.shape} vs {ref.shape}"
    assert jnp.allclose(out, ref, atol=1e-4, rtol=1e-4), "mismatch vs reference"

    print("KERNEL_OK")
</pallas_src>

<mosaic_0001>
module attributes {stable_mosaic.version = 11 : i64} {
  func.func @vae_kernel(%arg0: i32, %arg1: memref<256x128xf32, #tpu.memory_space<vmem>>, %arg2: memref<128x128xf32, #tpu.memory_space<vmem>>, %arg3: memref<1x128xf32, #tpu.memory_space<vmem>>, %arg4: memref<128x256xf32, #tpu.memory_space<vmem>>, %arg5: memref<1x256xf32, #tpu.memory_space<vmem>>, %arg6: memref<128x128xf32, #tpu.memory_space<vmem>>, %arg7: memref<1x128xf32, #tpu.memory_space<vmem>>, %arg8: memref<128x128xf32, #tpu.memory_space<vmem>>, %arg9: memref<1x128xf32, #tpu.memory_space<vmem>>, %arg10: memref<256x128xf32, #tpu.memory_space<vmem>>, %arg11: memref<256x128xf32, #tpu.memory_space<vmem>>) attributes {dimension_semantics = [#tpu.dimension_semantics<parallel>], iteration_bounds = array<i64: 2>, scalar_prefetch = 0 : i64, scratch_operands = 0 : i64, tpu.core_type = #tpu.core_type<tc>, window_params = [{transform_indices = @transform_0, window_bounds = array<i64: 256, 128>}, {pipeline_mode = #tpu.pipeline_mode<synchronous>, transform_indices = @transform_1, window_bounds = array<i64: 128, 128>}, {pipeline_mode = #tpu.pipeline_mode<synchronous>, transform_indices = @transform_2, window_bounds = array<i64: 1, 128>}, {pipeline_mode = #tpu.pipeline_mode<synchronous>, transform_indices = @transform_3, window_bounds = array<i64: 128, 256>}, {pipeline_mode = #tpu.pipeline_mode<synchronous>, transform_indices = @transform_4, window_bounds = array<i64: 1, 256>}, {pipeline_mode = #tpu.pipeline_mode<synchronous>, transform_indices = @transform_5, window_bounds = array<i64: 128, 128>}, {pipeline_mode = #tpu.pipeline_mode<synchronous>, transform_indices = @transform_6, window_bounds = array<i64: 1, 128>}, {pipeline_mode = #tpu.pipeline_mode<synchronous>, transform_indices = @transform_7, window_bounds = array<i64: 128, 128>}, {pipeline_mode = #tpu.pipeline_mode<synchronous>, transform_indices = @transform_8, window_bounds = array<i64: 1, 128>}, {transform_indices = @transform_9, window_bounds = array<i64: 256, 128>}, {transform_indices = @transform_10, window_bounds = array<i64: 256, 128>}]} {
    %c0 = arith.constant 0 : index
    %c0_0 = arith.constant 0 : index
    %0 = vector.load %arg1[%c0, %c0_0] : memref<256x128xf32, #tpu.memory_space<vmem>>, vector<256x128xf32>
    %c0_1 = arith.constant 0 : index
    %c0_2 = arith.constant 0 : index
    %1 = vector.load %arg2[%c0_1, %c0_2] : memref<128x128xf32, #tpu.memory_space<vmem>>, vector<128x128xf32>
    %cst = arith.constant dense<0.000000e+00> : vector<256x128xf32>
    %2 = tpu.matmul %0, %1, %cst {dimension_numbers = #tpu.dot_dimension_numbers<[1], [0], [0], [1], [0, 0, 1, 1], [], []>} : vector<256x128xf32>, vector<128x128xf32>, vector<256x128xf32> -> vector<256x128xf32>
    %c0_3 = arith.constant 0 : index
    %c0_4 = arith.constant 0 : index
    %3 = vector.load %arg3[%c0_3, %c0_4] : memref<1x128xf32, #tpu.memory_space<vmem>>, vector<1x128xf32>
    %4 = vector.broadcast %3 : vector<1x128xf32> to vector<256x128xf32>
    %5 = arith.addf %2, %4 : vector<256x128xf32>
    %cst_5 = arith.constant 0.000000e+00 : f32
    %6 = vector.broadcast %cst_5 : f32 to vector<256x128xf32>
    %7 = arith.maximumf %5, %6 : vector<256x128xf32>
    %c0_6 = arith.constant 0 : index
    %c0_7 = arith.constant 0 : index
    %8 = vector.load %arg4[%c0_6, %c0_7] : memref<128x256xf32, #tpu.memory_space<vmem>>, vector<128x256xf32>
    %cst_8 = arith.constant dense<0.000000e+00> : vector<256x256xf32>
    %9 = tpu.matmul %7, %8, %cst_8 {dimension_numbers = #tpu.dot_dimension_numbers<[1], [0], [0], [1], [0, 0, 1, 1], [], []>} : vector<256x128xf32>, vector<128x256xf32>, vector<256x256xf32> -> vector<256x256xf32>
    %c0_9 = arith.constant 0 : index
    %c0_10 = arith.constant 0 : index
    %10 = vector.load %arg5[%c0_9, %c0_10] : memref<1x256xf32, #tpu.memory_space<vmem>>, vector<1x256xf32>
    %11 = vector.broadcast %10 : vector<1x256xf32> to vector<256x256xf32>
    %12 = arith.addf %9, %11 : vector<256x256xf32>
    %13 = vector.extract_strided_slice %12 {offsets = [0, 0], sizes = [256, 128], strides = [1, 1]} : vector<256x256xf32> to vector<256x128xf32>
    %14 = vector.extract_strided_slice %12 {offsets = [0, 128], sizes = [256, 128], strides = [1, 1]} : vector<256x256xf32> to vector<256x128xf32>
    %15 = math.exp %14 : vector<256x128xf32>
    %c0_11 = arith.constant 0 : index
    %c0_12 = arith.constant 0 : index
    %16 = vector.load %arg10[%c0_11, %c0_12] : memref<256x128xf32, #tpu.memory_space<vmem>>, vector<256x128xf32>
    %17 = arith.mulf %15, %16 : vector<256x128xf32>
    %18 = arith.addf %13, %17 : vector<256x128xf32>
    %c0_13 = arith.constant 0 : index
    %c0_14 = arith.constant 0 : index
    %19 = vector.load %arg6[%c0_13, %c0_14] : memref<128x128xf32, #tpu.memory_space<vmem>>, vector<128x128xf32>
    %cst_15 = arith.constant dense<0.000000e+00> : vector<256x128xf32>
    %20 = tpu.matmul %18, %19, %cst_15 {dimension_numbers = #tpu.dot_dimension_numbers<[1], [0], [0], [1], [0, 0, 1, 1], [], []>} : vector<256x128xf32>, vector<128x128xf32>, vector<256x128xf32> -> vector<256x128xf32>
    %c0_16 = arith.constant 0 : index
    %c0_17 = arith.constant 0 : index
    %21 = vector.load %arg7[%c0_16, %c0_17] : memref<1x128xf32, #tpu.memory_space<vmem>>, vector<1x128xf32>
    %22 = vector.broadcast %21 : vector<1x128xf32> to vector<256x128xf32>
    %23 = arith.addf %20, %22 : vector<256x128xf32>
    %c0_18 = arith.constant 0 : index
    %c0_19 = arith.constant 0 : index
    %24 = vector.load %arg8[%c0_18, %c0_19] : memref<128x128xf32, #tpu.memory_space<vmem>>, vector<128x128xf32>
    %cst_20 = arith.constant dense<0.000000e+00> : vector<256x128xf32>
    %25 = tpu.matmul %23, %24, %cst_20 {dimension_numbers = #tpu.dot_dimension_numbers<[1], [0], [0], [1], [0, 0, 1, 1], [], []>} : vector<256x128xf32>, vector<128x128xf32>, vector<256x128xf32> -> vector<256x128xf32>
    %c0_21 = arith.constant 0 : index
    %c0_22 = arith.constant 0 : index
    %26 = vector.load %arg9[%c0_21, %c0_22] : memref<1x128xf32, #tpu.memory_space<vmem>>, vector<1x128xf32>
    %27 = vector.broadcast %26 : vector<1x128xf32> to vector<256x128xf32>
    %28 = arith.addf %25, %27 : vector<256x128xf32>
    %c0_23 = arith.constant 0 : index
    %c0_24 = arith.constant 0 : index
    %29 = vector.load %arg11[%c0_23, %c0_24] : memref<256x128xf32, #tpu.memory_space<vmem>>, vector<256x128xf32>
    tpu.vector_store %arg11[%c0_23, %c0_24], %28 {strides = array<i32>} : memref<256x128xf32, #tpu.memory_space<vmem>>, vector<256x128xf32>,
    return
  }
  func.func @transform_0(%arg0: i32) -> (i32, i32) {
    %c0_i32 = arith.constant 0 : i32
    %c0_i32_0 = arith.constant 0 : i32
    return %arg0, %c0_i32 : i32, i32
  }
  func.func @transform_1(%arg0: i32) -> (i32, i32) {
    %c0_i32 = arith.constant 0 : i32
    %c0_i32_0 = arith.constant 0 : i32
    %c0_i32_1 = arith.constant 0 : i32
    return %c0_i32, %c0_i32_0 : i32, i32
  }
  func.func @transform_2(%arg0: i32) -> (i32, i32) {
    %c0_i32 = arith.constant 0 : i32
    %c0_i32_0 = arith.constant 0 : i32
    %c0_i32_1 = arith.constant 0 : i32
    return %c0_i32, %c0_i32_0 : i32, i32
  }
  func.func @transform_3(%arg0: i32) -> (i32, i32) {
    %c0_i32 = arith.constant 0 : i32
    %c0_i32_0 = arith.constant 0 : i32
    %c0_i32_1 = arith.constant 0 : i32
    return %c0_i32, %c0_i32_0 : i32, i32
  }
  func.func @transform_4(%arg0: i32) -> (i32, i32) {
    %c0_i32 = arith.constant 0 : i32
    %c0_i32_0 = arith.constant 0 : i32
    %c0_i32_1 = arith.constant 0 : i32
    return %c0_i32, %c0_i32_0 : i32, i32
  }
  func.func @transform_5(%arg0: i32) -> (i32, i32) {
    %c0_i32 = arith.constant 0 : i32
    %c0_i32_0 = arith.constant 0 : i32
    %c0_i32_1 = arith.constant 0 : i32
    return %c0_i32, %c0_i32_0 : i32, i32
  }
  func.func @transform_6(%arg0: i32) -> (i32, i32) {
    %c0_i32 = arith.constant 0 : i32
    %c0_i32_0 = arith.constant 0 : i32
    %c0_i32_1 = arith.constant 0 : i32
    return %c0_i32, %c0_i32_0 : i32, i32
  }
  func.func @transform_7(%arg0: i32) -> (i32, i32) {
    %c0_i32 = arith.constant 0 : i32
    %c0_i32_0 = arith.constant 0 : i32
    %c0_i32_1 = arith.constant 0 : i32
    return %c0_i32, %c0_i32_0 : i32, i32
  }
  func.func @transform_8(%arg0: i32) -> (i32, i32) {
    %c0_i32 = arith.constant 0 : i32
    %c0_i32_0 = arith.constant 0 : i32
    %c0_i32_1 = arith.constant 0 : i32
    return %c0_i32, %c0_i32_0 : i32, i32
  }
  func.func @transform_9(%arg0: i32) -> (i32, i32) {
    %c0_i32 = arith.constant 0 : i32
    %c0_i32_0 = arith.constant 0 : i32
    return %arg0, %c0_i32 : i32, i32
  }
  func.func @transform_10(%arg0: i32) -> (i32, i32) {
    %c0_i32 = arith.constant 0 : i32
    %c0_i32_0 = arith.constant 0 : i32
    return %arg0, %c0_i32 : i32, i32
  }
}

</mosaic_0001>

<llo_original>
// kernel: tpu_custom_call.1
$region0: #{tpu_custom_call.1}
  #allocation0 [shape = 'u32[]', space=smem, size = 0x4, offset = 0x4, fixed_abs, tag = 'smem constant byte address 0x4 - core index']
  #allocation1 [shape = 'u32[144,128]{1,0:T(1,128)}', space=vmem, size = 0x12000, scoped, tag = 'internal scratch']
  %s0 = inlined_call_operand.hbm [shape: f32[512,128], index: 0, kind: input, shape index: {}]
  %s1 = inlined_call_operand.hbm [shape: f32[128,128], index: 1, kind: input, shape index: {}]
  %s2 = inlined_call_operand.vmem [shape: f32[1,128], index: 2, kind: input, shape index: {}]
  %s3 = inlined_call_operand.hbm [shape: f32[128,256], index: 3, kind: input, shape index: {}]
  %s4 = inlined_call_operand.vmem [shape: f32[1,256], index: 4, kind: input, shape index: {}]
  %s5 = inlined_call_operand.hbm [shape: f32[128,128], index: 5, kind: input, shape index: {}]
  %s6 = inlined_call_operand.vmem [shape: f32[1,128], index: 6, kind: input, shape index: {}]
  %s7 = inlined_call_operand.hbm [shape: f32[128,128], index: 7, kind: input, shape index: {}]
  %s8 = inlined_call_operand.vmem [shape: f32[1,128], index: 8, kind: input, shape index: {}]
  %s9 = inlined_call_operand.hbm [shape: f32[512,128], index: 9, kind: input, shape index: {}]
  %s10 = inlined_call_operand.hbm [shape: f32[512,128], index: 10, kind: output, shape index: {}]
  %s11 = sld [smem:[#allocation0]]
  $region97: #{tpu_custom_call.1} parent=0
    _
  %s13 = ssub.s32 1, %s11
  %s14 = scalar_select 0, %s13, %s11
  $region1: #{tpu_custom_call.1} parent=0
    #allocation2 [shape = 'u8[262144]{0}', space=vmem, size = 0x40000, scoped, tag = 'input window, operand 0']
    #allocation3 [shape = 's32[2]{0}', space=sflag, size = 0x8, scoped, tag = 'scoped memory for tpu_custom_call.1']
    #allocation4 [shape = 's32[2]{0}', space=sflag, size = 0x8, scoped, tag = 'scoped memory for tpu_custom_call.1']
    #allocation5 [shape = 'u8[65536]{0}', space=vmem, size = 0x10000, scoped, tag = 'input window, operand 1, single buffered']
    #allocation6 [shape = 's32[1]{0}', space=sflag, size = 0x4, scoped, tag = 'scoped memory for tpu_custom_call.1']
    #allocation7 [shape = 'u8[131072]{0}', space=vmem, size = 0x20000, scoped, tag = 'input window, operand 3, single buffered']
    #allocation8 [shape = 'u8[65536]{0}', space=vmem, size = 0x10000, scoped, tag = 'input window, operand 5, single buffered']
    #allocation9 [shape = 's32[1]{0}', space=sflag, size = 0x4, scoped, tag = 'scoped memory for tpu_custom_call.1']
    #allocation10 [shape = 'u8[65536]{0}', space=vmem, size = 0x10000, scoped, tag = 'input window, operand 7, single buffered']
    #allocation11 [shape = 'u8[262144]{0}', space=vmem, size = 0x40000, scoped, tag = 'input window, operand 9']
    #allocation12 [shape = 's32[2]{0}', space=sflag, size = 0x8, scoped, tag = 'scoped memory for tpu_custom_call.1']
    #allocation13 [shape = 'u8[262144]{0}', space=vmem, size = 0x40000, scoped, tag = 'output window, operand 0']
    %15 = vsyncpa [#allocation3], 0
    %s16 = scalar_lea.sflag [#allocation3], 1
    %17 = vsyncpa %s16, 0
    %18 = vsyncpa [#allocation6], 0
    %19 = vsyncpa [#allocation9], 0
    %20 = vsyncpa [#allocation12], 0
    %s21 = scalar_lea.sflag [#allocation12], 1
    %22 = vsyncpa %s21, 0
    %23 = vsyncpa [#allocation4], 0
    %s24 = scalar_lea.sflag [#allocation4], 1
    %25 = vsyncpa %s24, 0
    loop: start=0, step=1, limit=4
    $region2: #{tpu_custom_call.1} parent=1 // loop_pre_header
      _
    $region3: #{tpu_custom_call.1} parent=1 // loop_header
      %s27 = sphi 0, %s31
      %p28 = scmp.ge.s32.totalorder %s27, 4
      %s37 = sphi 0, %s39
      %s40 = sphi 0, %s37
      %s41 = sphi 0, %s40
      %s57 = sphi 0, %s41
      %s61 = sphi 0, %s61
      %s63 = sphi 0, %s61
      %s64 = sphi 0, %s63
      %s78 = sphi 0, %s64
      %s82 = sphi 0, %s82
      %s84 = sphi 0, %s82
      %s85 = sphi 0, %s84
      %s99 = sphi 0, %s85
      %s103 = sphi 0, %s103
      %s105 = sphi 0, %s103
      %s106 = sphi 0, %s105
      %s120 = sphi 0, %s106
      %s124 = sphi 0, %s124
      %s126 = sphi 0, %s124
      %s127 = sphi 0, %s126
      %s141 = sphi 0, %s127
      %s145 = sphi 0, %s145
      %s147 = sphi 0, %s145
      %s148 = sphi 0, %s147
      %s162 = sphi 0, %s148
      %s166 = sphi 0, %s166
      %s168 = sphi 0, %s166
      %s169 = sphi 0, %s168
      %s183 = sphi 0, %s169
      %s187 = sphi 0, %s187
      %s189 = sphi 0, %s187
      %s190 = sphi 0, %s189
      %s204 = sphi 0, %s190
      %s208 = sphi 0, %s208
      %s210 = sphi 0, %s208
      %s211 = sphi 0, %s210
      %s225 = sphi 0, %s211
      %s231 = sphi 0, %s233
      %s234 = sphi 0, %s231
      %s235 = sphi 0, %s234
      %s251 = sphi 0, %s235
      %s257 = sphi 0, %s259
      %s260 = sphi 0, %s257
      %s261 = sphi 0, %s260
      %s277 = sphi 0, %s261
    $region4: #{tpu_custom_call.1} parent=1 // loop_header_branch
      %30 = sbr.rel (%p28) target = $region8
    $region5: #{tpu_custom_call.1} parent=1 // loop_body
      %s32 = ssub.s32 %s27, 1
      %s33 = ssub.s32 %s27, 2
      %s34 = sadd.s32 %s27, 1
      %s35 = ssub.s32 %s27, %s34
      %p36 = scmp.eq.s32.totalorder %s35, 0
      %s38 = sadd.s32 %s37, 1
      %s39 = scalar_select %p36, %s37, %s38
      %p42 = pneg %p36
      %p43 = scmp.eq.s32.totalorder %s27, 1
      %p44 = por %p42, %p43
      %p45 = scmp.ne.s32.totalorder %s37, %s40
      %p46 = scmp.eq.s32.totalorder %s27, 0
      %p47 = por %p45, %p46
      %p48 = scmp.ne.s32.totalorder %s37, %s40
      %p49 = scmp.eq.s32.totalorder %s32, 1
      %p50 = por %p48, %p49
      %p51 = scmp.ne.s32.totalorder %s40, %s41
      %p52 = scmp.eq.s32.totalorder %s32, 0
      %p53 = por %p51, %p52
      %p54 = scmp.ne.s32.totalorder %s40, %s41
      %p55 = scmp.eq.s32.totalorder %s33, 1
      %p56 = por %p54, %p55
      %p58 = scmp.ne.s32.totalorder %s41, %s57
      %p59 = scmp.eq.s32.totalorder %s33, 0
      %p60 = por %p58, %p59
      %s62 = sadd.s32 %s61, 1
      %p65 = scmp.eq.s32.totalorder %s27, 1
      %p66 = scmp.ne.s32.totalorder %s61, %s63
      %p67 = scmp.eq.s32.totalorder %s27, 0
      %p68 = por %p66, %p67
      %p69 = scmp.ne.s32.totalorder %s61, %s63
      %p70 = scmp.eq.s32.totalorder %s32, 1
      %p71 = por %p69, %p70
      %p72 = scmp.ne.s32.totalorder %s63, %s64
      %p73 = scmp.eq.s32.totalorder %s32, 0
      %p74 = por %p72, %p73
      %p75 = scmp.ne.s32.totalorder %s63, %s64
      %p76 = scmp.eq.s32.totalorder %s33, 1
      %p77 = por %p75, %p76
      %p79 = scmp.ne.s32.totalorder %s64, %s78
      %p80 = scmp.eq.s32.totalorder %s33, 0
      %p81 = por %p79, %p80
      %s83 = sadd.s32 %s82, 1
      %p86 = scmp.eq.s32.totalorder %s27, 1
      %p87 = scmp.ne.s32.totalorder %s82, %s84
      %p88 = scmp.eq.s32.totalorder %s27, 0
      %p89 = por %p87, %p88
      %p90 = scmp.ne.s32.totalorder %s82, %s84
      %p91 = scmp.eq.s32.totalorder %s32, 1
      %p92 = por %p90, %p91
      %p93 = scmp.ne.s32.totalorder %s84, %s85
      %p94 = scmp.eq.s32.totalorder %s32, 0
      %p95 = por %p93, %p94
      %p96 = scmp.ne.s32.totalorder %s84, %s85
      %p97 = scmp.eq.s32.totalorder %s33, 1
      %p98 = por %p96, %p97
      %p100 = scmp.ne.s32.totalorder %s85, %s99
      %p101 = scmp.eq.s32.totalorder %s33, 0
      %p102 = por %p100, %p101
      %s104 = sadd.s32 %s103, 1
      %p107 = scmp.eq.s32.totalorder %s27, 1
      %p108 = scmp.ne.s32.totalorder %s103, %s105
      %p109 = scmp.eq.s32.totalorder %s27, 0
      %p110 = por %p108, %p109
      %p111 = scmp.ne.s32.totalorder %s103, %s105
      %p112 = scmp.eq.s32.totalorder %s32, 1
      %p113 = por %p111, %p112
      %p114 = scmp.ne.s32.totalorder %s105, %s106
      %p115 = scmp.eq.s32.totalorder %s32, 0
      %p116 = por %p114, %p115
      %p117 = scmp.ne.s32.totalorder %s105, %s106
      %p118 = scmp.eq.s32.totalorder %s33, 1
      %p119 = por %p117, %p118
      %p121 = scmp.ne.s32.totalorder %s106, %s120
      %p122 = scmp.eq.s32.totalorder %s33, 0
      %p123 = por %p121, %p122
      %s125 = sadd.s32 %s124, 1
      %p128 = scmp.eq.s32.totalorder %s27, 1
      %p129 = scmp.ne.s32.totalorder %s124, %s126
      %p130 = scmp.eq.s32.totalorder %s27, 0
      %p131 = por %p129, %p130
      %p132 = scmp.ne.s32.totalorder %s124, %s126
      %p133 = scmp.eq.s32.totalorder %s32, 1
      %p134 = por %p132, %p133
      %p135 = scmp.ne.s32.totalorder %s126, %s127
      %p136 = scmp.eq.s32.totalorder %s32, 0
      %p137 = por %p135, %p136
      %p138 = scmp.ne.s32.totalorder %s126, %s127
      %p139 = scmp.eq.s32.totalorder %s33, 1
      %p140 = por %p138, %p139
      %p142 = scmp.ne.s32.totalorder %s127, %s141
      %p143 = scmp.eq.s32.totalorder %s33, 0
      %p144 = por %p142, %p143
      %s146 = sadd.s32 %s145, 1
      %p149 = scmp.eq.s32.totalorder %s27, 1
      %p150 = scmp.ne.s32.totalorder %s145, %s147
      %p151 = scmp.eq.s32.totalorder %s27, 0
      %p152 = por %p150, %p151
      %p153 = scmp.ne.s32.totalorder %s145, %s147
      %p154 = scmp.eq.s32.totalorder %s32, 1
      %p155 = por %p153, %p154
      %p156 = scmp.ne.s32.totalorder %s147, %s148
      %p157 = scmp.eq.s32.totalorder %s32, 0
      %p158 = por %p156, %p157
      %p159 = scmp.ne.s32.totalorder %s147, %s148
      %p160 = scmp.eq.s32.totalorder %s33, 1
      %p161 = por %p159, %p160
      %p163 = scmp.ne.s32.totalorder %s148, %s162
      %p164 = scmp.eq.s32.totalorder %s33, 0
      %p165 = por %p163, %p164
      %s167 = sadd.s32 %s166, 1
      %p170 = scmp.eq.s32.totalorder %s27, 1
      %p171 = scmp.ne.s32.totalorder %s166, %s168
      %p172 = scmp.eq.s32.totalorder %s27, 0
      %p173 = por %p171, %p172
      %p174 = scmp.ne.s32.totalorder %s166, %s168
      %p175 = scmp.eq.s32.totalorder %s32, 1
      %p176 = por %p174, %p175
      %p177 = scmp.ne.s32.totalorder %s168, %s169
      %p178 = scmp.eq.s32.totalorder %s32, 0
      %p179 = por %p177, %p178
      %p180 = scmp.ne.s32.totalorder %s168, %s169
      %p181 = scmp.eq.s32.totalorder %s33, 1
      %p182 = por %p180, %p181
      %p184 = scmp.ne.s32.totalorder %s169, %s183
      %p185 = scmp.eq.s32.totalorder %s33, 0
      %p186 = por %p184, %p185
      %s188 = sadd.s32 %s187, 1
      %p191 = scmp.eq.s32.totalorder %s27, 1
      %p192 = scmp.ne.s32.totalorder %s187, %s189
      %p193 = scmp.eq.s32.totalorder %s27, 0
      %p194 = por %p192, %p193
      %p195 = scmp.ne.s32.totalorder %s187, %s189
      %p196 = scmp.eq.s32.totalorder %s32, 1
      %p197 = por %p195, %p196
      %p198 = scmp.ne.s32.totalorder %s189, %s190
      %p199 = scmp.eq.s32.totalorder %s32, 0
      %p200 = por %p198, %p199
      %p201 = scmp.ne.s32.totalorder %s189, %s190
      %p202 = scmp.eq.s32.totalorder %s33, 1
      %p203 = por %p201, %p202
      %p205 = scmp.ne.s32.totalorder %s190, %s204
      %p206 = scmp.eq.s32.totalorder %s33, 0
      %p207 = por %p205, %p206
      %s209 = sadd.s32 %s208, 1
      %p212 = scmp.eq.s32.totalorder %s27, 1
      %p213 = scmp.ne.s32.totalorder %s208, %s210
      %p214 = scmp.eq.s32.totalorder %s27, 0
      %p215 = por %p213, %p214
      %p216 = scmp.ne.s32.totalorder %s208, %s210
      %p217 = scmp.eq.s32.totalorder %s32, 1
      %p218 = por %p216, %p217
      %p219 = scmp.ne.s32.totalorder %s210, %s211
      %p220 = scmp.eq.s32.totalorder %s32, 0
      %p221 = por %p219, %p220
      %p222 = scmp.ne.s32.totalorder %s210, %s211
      %p223 = scmp.eq.s32.totalorder %s33, 1
      %p224 = por %p222, %p223
      %p226 = scmp.ne.s32.totalorder %s211, %s225
      %p227 = scmp.eq.s32.totalorder %s33, 0
      %p228 = por %p226, %p227
      %s229 = ssub.s32 %s27, %s34
      %p230 = scmp.eq.s32.totalorder %s229, 0
      %s232 = sadd.s32 %s231, 1
      %s233 = scalar_select %p230, %s231, %s232
      %p236 = pneg %p230
      %p237 = scmp.eq.s32.totalorder %s27, 1
      %p238 = por %p236, %p237
      %p239 = scmp.ne.s32.totalorder %s231, %s234
      %p240 = scmp.eq.s32.totalorder %s27, 0
      %p241 = por %p239, %p240
      %p242 = scmp.ne.s32.totalorder %s231, %s234
      %p243 = scmp.eq.s32.totalorder %s32, 1
      %p244 = por %p242, %p243
      %p245 = scmp.ne.s32.totalorder %s234, %s235
      %p246 = scmp.eq.s32.totalorder %s32, 0
      %p247 = por %p245, %p246
      %p248 = scmp.ne.s32.totalorder %s234, %s235
      %p249 = scmp.eq.s32.totalorder %s33, 1
      %p250 = por %p248, %p249
      %p252 = scmp.ne.s32.totalorder %s235, %s251
      %p253 = scmp.eq.s32.totalorder %s33, 0
      %p254 = por %p252, %p253
      %s255 = ssub.s32 %s27, %s34
      %p256 = scmp.eq.s32.totalorder %s255, 0
      %s258 = sadd.s32 %s257, 1
      %s259 = scalar_select %p256, %s257, %s258
      %p262 = pneg %p256
      %p263 = scmp.eq.s32.totalorder %s27, 1
      %p264 = por %p262, %p263
      %p265 = scmp.ne.s32.totalorder %s257, %s260
      %p266 = scmp.eq.s32.totalorder %s27, 0
      %p267 = por %p265, %p266
      %p268 = scmp.ne.s32.totalorder %s257, %s260
      %p269 = scmp.eq.s32.totalorder %s32, 1
      %p270 = por %p268, %p269
      %p271 = scmp.ne.s32.totalorder %s260, %s261
      %p272 = scmp.eq.s32.totalorder %s32, 0
      %p273 = por %p271, %p272
      %p274 = scmp.ne.s32.totalorder %s260, %s261
      %p275 = scmp.eq.s32.totalorder %s33, 1
      %p276 = por %p274, %p275
      %p278 = scmp.ne.s32.totalorder %s261, %s277
      %p279 = scmp.eq.s32.totalorder %s33, 0
      %p280 = por %p278, %p279
      %p281 = scmp.le.s32.totalorder 1, %s27
      %p282 = scmp.lt.s32.totalorder %s27, 3
      %p283 = pnand %p281, %p282
      %p284 = pneg %p283
      // Predicated region
      $region9: #{tpu_custom_call.1} parent=5 // pred_check
        _
      $region10: #{tpu_custom_call.1} parent=5 // pred_check_branch
        %286 = sbr.rel (%p283) target = $region12
      $region11: #{tpu_custom_call.1} parent=5 // pred_region
        %s287 = ssub.s32 %s27, 1
        // Predicated region
        $region13: #{tpu_custom_call.1} parent=11 // pred_check
          %p288 = pneg %p74
        $region14: #{tpu_custom_call.1} parent=11 // pred_check_branch
          %290 = sbr.rel (%p288) target = $region16
        $region15: #{tpu_custom_call.1} parent=11 // pred_region
          %s292 = ssub.s32 2048, 2048
          %293 = vsyncadd [#allocation6], %s292
          %s294 = sshll.u32 [#allocation5], 4
          %s295 = int_to_ptr.vmem [resolvable:$true] %s294
          %300 = dma.hbm_to_vmem [thread:$0]  %s1, 2048, %s295, [#allocation6], 128, 128, 8
        $region16: #{tpu_custom_call.1} parent=11 // pred_fallthru
          _
        // Predicated region
        $region17: #{tpu_custom_call.1} parent=11 // pred_check
          %p301 = pneg %p95
        $region18: #{tpu_custom_call.1} parent=11 // pred_check_branch
          %303 = sbr.rel (%p301) target = $region20
        $region19: #{tpu_custom_call.1} parent=11 // pred_region
          _
        $region20: #{tpu_custom_call.1} parent=11 // pred_fallthru
          _
        // Predicated region
        $region21: #{tpu_custom_call.1} parent=11 // pred_check
          %p304 = pneg %p116
        $region22: #{tpu_custom_call.1} parent=11 // pred_check_branch
          %306 = sbr.rel (%p304) target = $region24
        $region23: #{tpu_custom_call.1} parent=11 // pred_region
          %s308 = ssub.s32 4096, 4096
          %309 = vsyncadd [#allocation6], %s308
          %s310 = sshll.u32 [#allocation7], 4
          %s311 = int_to_ptr.vmem [resolvable:$true] %s310
          %316 = dma.hbm_to_vmem [thread:$0]  %s3, 4096, %s311, [#allocation6], 256, 256, 16
        $region24: #{tpu_custom_call.1} parent=11 // pred_fallthru
          _
        // Predicated region
        $region25: #{tpu_custom_call.1} parent=11 // pred_check
          %p317 = pneg %p137
        $region26: #{tpu_custom_call.1} parent=11 // pred_check_branch
          %319 = sbr.rel (%p317) target = $region28
        $region27: #{tpu_custom_call.1} parent=11 // pred_region
          _
        $region28: #{tpu_custom_call.1} parent=11 // pred_fallthru
          _
        // Predicated region
        $region29: #{tpu_custom_call.1} parent=11 // pred_check
          %p320 = pneg %p158
        $region30: #{tpu_custom_call.1} parent=11 // pred_check_branch
          %322 = sbr.rel (%p320) target = $region32
        $region31: #{tpu_custom_call.1} parent=11 // pred_region
          %s324 = ssub.s32 2048, 2048
          %325 = vsyncadd [#allocation9], %s324
          %s326 = sshll.u32 [#allocation8], 4
          %s327 = int_to_ptr.vmem [resolvable:$true] %s326
          %332 = dma.hbm_to_vmem [thread:$0]  %s5, 2048, %s327, [#allocation9], 128, 128, 8
        $region32: #{tpu_custom_call.1} parent=11 // pred_fallthru
          _
        // Predicated region
        $region33: #{tpu_custom_call.1} parent=11 // pred_check
          %p333 = pneg %p179
        $region34: #{tpu_custom_call.1} parent=11 // pred_check_branch
          %335 = sbr.rel (%p333) target = $region36
        $region35: #{tpu_custom_call.1} parent=11 // pred_region
          _
        $region36: #{tpu_custom_call.1} parent=11 // pred_fallthru
          _
        // Predicated region
        $region37: #{tpu_custom_call.1} parent=11 // pred_check
          %p336 = pneg %p200
        $region38: #{tpu_custom_call.1} parent=11 // pred_check_branch
          %338 = sbr.rel (%p336) target = $region40
        $region39: #{tpu_custom_call.1} parent=11 // pred_region
          %s340 = ssub.s32 2048, 2048
          %341 = vsyncadd [#allocation9], %s340
          %s342 = sshll.u32 [#allocation10], 4
          %s343 = int_to_ptr.vmem [resolvable:$true] %s342
          %348 = dma.hbm_to_vmem [thread:$0]  %s7, 2048, %s343, [#allocation9], 128, 128, 8
        $region40: #{tpu_custom_call.1} parent=11 // pred_fallthru
          _
        // Predicated region
        $region41: #{tpu_custom_call.1} parent=11 // pred_check
          %p349 = pneg %p221
        $region42: #{tpu_custom_call.1} parent=11 // pred_check_branch
          %351 = sbr.rel (%p349) target = $region44
        $region43: #{tpu_custom_call.1} parent=11 // pred_region
          _
        $region44: #{tpu_custom_call.1} parent=11 // pred_fallthru
          _
      $region12: #{tpu_custom_call.1} parent=5 // pred_fallthru
        _
      %p352 = scmp.lt.s32.totalorder %s27, 2
      // Predicated region
      $region45: #{tpu_custom_call.1} parent=5 // pred_check
        %p353 = pneg %p352
      $region46: #{tpu_custom_call.1} parent=5 // pred_check_branch
        %355 = sbr.rel (%p353) target = $region48
      $region47: #{tpu_custom_call.1} parent=5 // pred_region
        // Predicated region
        $region49: #{tpu_custom_call.1} parent=47 // pred_check
          %p356 = pneg %p47
        $region50: #{tpu_custom_call.1} parent=47 // pred_check_branch
          %358 = sbr.rel (%p356) target = $region52
        $region51: #{tpu_custom_call.1} parent=47 // pred_region
          %s359 = sand.u32 %s37, 1
          %s360 = scalar_lea.sflag [#allocation3], %s359
          %s361 = sand.u32 %s37, 1
          %s362 = smul.addr %s361, 256
          %s363 = scalar_lea.vmem [#allocation2], %s362
          %s364 = smul.u32 32, %s27
          %s366 = ssub.s32 4096, 4096
          %367 = vsyncadd %s360, %s366
          %s368 = smul.addr %s364, 128
          %s369 = scalar_lea.hbm %s0, %s368
          %s370 = sshll.u32 %s363, 4
          %s371 = int_to_ptr.vmem [resolvable:$true] %s370
          %376 = dma.hbm_to_vmem [thread:$0]  %s369, 4096, %s371, %s360, 128, 128, 8
        $region52: #{tpu_custom_call.1} parent=47 // pred_fallthru
          _
        // Predicated region
        $region53: #{tpu_custom_call.1} parent=47 // pred_check
          %p377 = pneg %p241
        $region54: #{tpu_custom_call.1} parent=47 // pred_check_branch
          %379 = sbr.rel (%p377) target = $region56
        $region55: #{tpu_custom_call.1} parent=47 // pred_region
          %s380 = sand.u32 %s231, 1
          %s381 = scalar_lea.sflag [#allocation12], %s380
          %s382 = sand.u32 %s231, 1
          %s383 = smul.addr %s382, 256
          %s384 = scalar_lea.vmem [#allocation11], %s383
          %s385 = smul.u32 32, %s27
          %s387 = ssub.s32 4096, 4096
          %388 = vsyncadd %s381, %s387
          %s389 = smul.addr %s385, 128
          %s390 = scalar_lea.hbm %s9, %s389
          %s391 = sshll.u32 %s384, 4
          %s392 = int_to_ptr.vmem [resolvable:$true] %s391
          %397 = dma.hbm_to_vmem [thread:$0]  %s390, 4096, %s392, %s381, 128, 128, 8
        $region56: #{tpu_custom_call.1} parent=47 // pred_fallthru
          _
      $region48: #{tpu_custom_call.1} parent=5 // pred_fallthru
        _
      %p398 = scmp.le.s32.totalorder 1, %s27
      %p399 = scmp.lt.s32.totalorder %s27, 3
      %p400 = pnand %p398, %p399
      %p401 = pneg %p400
      // Predicated region
      $region57: #{tpu_custom_call.1} parent=5 // pred_check
        _
      $region58: #{tpu_custom_call.1} parent=5 // pred_check_branch
        %403 = sbr.rel (%p400) target = $region60
      $region59: #{tpu_custom_call.1} parent=5 // pred_region
        %s404 = ssub.s32 %s27, 1
        %s405 = sand.u32 %s40, 1
        %s406 = scalar_lea.sflag [#allocation3], %s405
        %s407 = sand.u32 %s40, 1
        %s408 = smul.addr %s407, 256
        %s409 = scalar_lea.vmem [#allocation2], %s408
        // Predicated region
        $region61: #{tpu_custom_call.1} parent=59 // pred_check
          %p410 = pneg %p53
        $region62: #{tpu_custom_call.1} parent=59 // pred_check_branch
          %412 = sbr.rel (%p410) target = $region64
        $region63: #{tpu_custom_call.1} parent=59 // pred_region
          %413 = dma.done %s406, 4096
        $region64: #{tpu_custom_call.1} parent=59 // pred_fallthru
          _
        // Predicated region
        $region65: #{tpu_custom_call.1} parent=59 // pred_check
          %p414 = pneg %p74
        $region66: #{tpu_custom_call.1} parent=59 // pred_check_branch
          %416 = sbr.rel (%p414) target = $region68
        $region67: #{tpu_custom_call.1} parent=59 // pred_region
          %417 = dma.done [#allocation6], 2048
        $region68: #{tpu_custom_call.1} parent=59 // pred_fallthru
          _
        // Predicated region
        $region69: #{tpu_custom_call.1} parent=59 // pred_check
          %p418 = pneg %p116
        $region70: #{tpu_custom_call.1} parent=59 // pred_check_branch
          %420 = sbr.rel (%p418) target = $region72
        $region71: #{tpu_custom_call.1} parent=59 // pred_region
          %421 = dma.done [#allocation6], 4096
        $region72: #{tpu_custom_call.1} parent=59 // pred_fallthru
          _
        // Predicated region
        $region73: #{tpu_custom_call.1} parent=59 // pred_check
          %p422 = pneg %p158
        $region74: #{tpu_custom_call.1} parent=59 // pred_check_branch
          %424 = sbr.rel (%p422) target = $region76
        $region75: #{tpu_custom_call.1} parent=59 // pred_region
          %425 = dma.done [#allocation9], 2048
        $region76: #{tpu_custom_call.1} parent=59 // pred_fallthru
          _
        // Predicated region
        $region77: #{tpu_custom_call.1} parent=59 // pred_check
          %p426 = pneg %p200
        $region78: #{tpu_custom_call.1} parent=59 // pred_check_branch
          %428 = sbr.rel (%p426) target = $region80
        $region79: #{tpu_custom_call.1} parent=59 // pred_region
          %429 = dma.done [#allocation9], 2048
        $region80: #{tpu_custom_call.1} parent=59 // pred_fallthru
          _
        %s430 = sand.u32 %s234, 1
        %s431 = scalar_lea.sflag [#allocation12], %s430
        %s432 = sand.u32 %s234, 1
        %s433 = smul.addr %s432, 256
        %s434 = scalar_lea.vmem [#allocation11], %s433
        // Predicated region
        $region81: #{tpu_custom_call.1} parent=59 // pred_check
          %p435 = pneg %p247
        $region82: #{tpu_custom_call.1} parent=59 // pred_check_branch
          %437 = sbr.rel (%p435) target = $region84
        $region83: #{tpu_custom_call.1} parent=59 // pred_region
          %438 = dma.done %s431, 4096
        $region84: #{tpu_custom_call.1} parent=59 // pred_fallthru
          _
        %s439 = sand.u32 %s40, 1
        %s440 = scalar_lea.sflag [#allocation3], %s439
        %s441 = sand.u32 %s40, 1
        %s442 = smul.addr %s441, 256
        %s443 = scalar_lea.vmem [#allocation2], %s442
        %p444 = pneg %p53
        %p445 = pneg %p50
        %p446 = pneg %p74
        %p447 = pneg %p71
        %p448 = pneg %p95
        %p449 = pneg %p92
        %p450 = pneg %p116
        %p451 = pneg %p113
        %p452 = pneg %p137
        %p453 = pneg %p134
        %p454 = pneg %p158
        %p455 = pneg %p155
        %p456 = pneg %p179
        %p457 = pneg %p176
        %p458 = pneg %p200
        %p459 = pneg %p197
        %p460 = pneg %p221
        %p461 = pneg %p218
        %s462 = sand.u32 %s234, 1
        %s463 = scalar_lea.sflag [#allocation12], %s462
        %s464 = sand.u32 %s234, 1
        %s465 = smul.addr %s464, 256
        %s466 = scalar_lea.vmem [#allocation11], %s465
        %p467 = pneg %p247
        %p468 = pneg %p244
        %p469 = pneg %p273
        %p470 = pneg %p270
        %s471 = sand.u32 %s260, 1
        %s472 = scalar_lea.sflag [#allocation4], %s471
        %s473 = sand.u32 %s260, 1
        %s474 = smul.addr %s473, 256
        %s475 = scalar_lea.vmem [#allocation13], %s474
        %s476 = smul.u32 32, %s32
        %s477 = smul.u32 32, %s32
        %s478 = smul.u32 32, %s32
        %v479 = vld [vmem:[%s409] sm:$0xff]
        %v480 = vld [vmem:[%s409 + $0x8] sm:$0xff]
        %v481 = vld [vmem:[%s409 + $0x10] sm:$0xff]
        %v482 = vld [vmem:[%s409 + $0x18] sm:$0xff]
        %v483 = vld [vmem:[%s409 + $0x20] sm:$0xff]
        %v484 = vld [vmem:[%s409 + $0x28] sm:$0xff]
        %v485 = vld [vmem:[%s409 + $0x30] sm:$0xff]
        %v486 = vld [vmem:[%s409 + $0x38] sm:$0xff]
        %v487 = vld [vmem:[%s409 + $0x40] sm:$0xff]
        %v488 = vld [vmem:[%s409 + $0x48] sm:$0xff]
        %v489 = vld [vmem:[%s409 + $0x50] sm:$0xff]
        %v490 = vld [vmem:[%s409 + $0x58] sm:$0xff]
        %v491 = vld [vmem:[%s409 + $0x60] sm:$0xff]
        %v492 = vld [vmem:[%s409 + $0x68] sm:$0xff]
        %v493 = vld [vmem:[%s409 + $0x70] sm:$0xff]
        %v494 = vld [vmem:[%s409 + $0x78] sm:$0xff]
        %v495 = vld [vmem:[%s409 + $0x80] sm:$0xff]
        %v496 = vld [vmem:[%s409 + $0x88] sm:$0xff]
        %v497 = vld [vmem:[%s409 + $0x90] sm:$0xff]
        %v498 = vld [vmem:[%s409 + $0x98] sm:$0xff]
        %v499 = vld [vmem:[%s409 + $0xa0] sm:$0xff]
        %v500 = vld [vmem:[%s409 + $0xa8] sm:$0xff]
        %v501 = vld [vmem:[%s409 + $0xb0] sm:$0xff]
        %v502 = vld [vmem:[%s409 + $0xb8] sm:$0xff]
        %v503 = vld [vmem:[%s409 + $0xc0] sm:$0xff]
        %v504 = vld [vmem:[%s409 + $0xc8] sm:$0xff]
        %v505 = vld [vmem:[%s409 + $0xd0] sm:$0xff]
        %v506 = vld [vmem:[%s409 + $0xd8] sm:$0xff]
        %v507 = vld [vmem:[%s409 + $0xe0] sm:$0xff]
        %v508 = vld [vmem:[%s409 + $0xe8] sm:$0xff]
        %v509 = vld [vmem:[%s409 + $0xf0] sm:$0xff]
        %v510 = vld [vmem:[%s409 + $0xf8] sm:$0xff]
        %v511 = vld [vmem:[#allocation5] sm:$0xff]
        %v512 = vld [vmem:[#allocation5 + $0x8] sm:$0xff]
        %v513 = vld [vmem:[#allocation5 + $0x10] sm:$0xff]
        %v514 = vld [vmem:[#allocation5 + $0x18] sm:$0xff]
        %v515 = vld [vmem:[#allocation5 + $0x20] sm:$0xff]
        %v516 = vld [vmem:[#allocation5 + $0x28] sm:$0xff]
        %v517 = vld [vmem:[#allocation5 + $0x30] sm:$0xff]
        %v518 = vld [vmem:[#allocation5 + $0x38] sm:$0xff]
        %v519 = vld [vmem:[#allocation5 + $0x40] sm:$0xff]
        %v520 = vld [vmem:[#allocation5 + $0x48] sm:$0xff]
        %v521 = vld [vmem:[#allocation5 + $0x50] sm:$0xff]
        %v522 = vld [vmem:[#allocation5 + $0x58] sm:$0xff]
        %v523 = vld [vmem:[#allocation5 + $0x60] sm:$0xff]
        %v524 = vld [vmem:[#allocation5 + $0x68] sm:$0xff]
        %v525 = vld [vmem:[#allocation5 + $0x70] sm:$0xff]
        %v526 = vld [vmem:[#allocation5 + $0x78] sm:$0xff]
        %v527 = vld [vmem:[%s2] sm:$0x1]
        %v529 = vlaneseq
        %v530 = vshrl.u32 %v529, 7
        %v531 = vsub.s32 0, %v530
        %v532 = vrot.slane %v527, %v531
        %534 = vmatprep.subr.mxu0 0.0
        %535 = vmatpush1.msra.mxu0 %v526
        %536 = vmatprep.subr.mxu0 0.0
        %537 = vmatpush1.msra.mxu0 %v525
        %538 = vmatprep.subr.mxu0 0.0
        %539 = vmatpush1.msra.mxu0 %v524
        %540 = vmatprep.subr.mxu0 0.0
        %541 = vmatpush1.msra.mxu0 %v523
        %542 = vmatprep.subr.mxu0 0.0
        %543 = vmatpush1.msra.mxu0 %v522
        %544 = vmatprep.subr.mxu0 0.0
        %545 = vmatpush1.msra.mxu0 %v521
        %546 = vmatprep.subr.mxu0 0.0
        %547 = vmatpush1.msra.mxu0 %v520
        %548 = vmatprep.subr.mxu0 0.0
        %549 = vmatpush1.msra.mxu0 %v519
        %550 = vmatprep.subr.mxu0 0.0
        %551 = vmatpush1.msra.mxu0 %v518
        %552 = vmatprep.subr.mxu0 0.0
        %553 = vmatpush1.msra.mxu0 %v517
        %554 = vmatprep.subr.mxu0 0.0
        %555 = vmatpush1.msra.mxu0 %v516
        %556 = vmatprep.subr.mxu0 0.0
        %557 = vmatpush1.msra.mxu0 %v515
        %558 = vmatprep.subr.mxu0 0.0
        %559 = vmatpush1.msra.mxu0 %v514
        %560 = vmatprep.subr.mxu0 0.0
        %561 = vmatpush1.msra.mxu0 %v513
        %562 = vmatprep.subr.mxu0 0.0
        %563 = vmatpush1.msra.mxu0 %v512
        %564 = vmatprep.subr.mxu0 0.0
        %565 = vmatpush1.msra.mxu0 %v511
        %566 = vmatprep.subr.mxu0 0.0
        %567 = vmatpush2.msra.mxu0 0.0
        %568 = vmatprep.subr.mxu0 0.0
        %569 = vmatpush2.msra.mxu0 0.0
        %570 = vmatprep.subr.mxu0 0.0
        %571 = vmatpush2.msra.mxu0 0.0
        %572 = vmatprep.subr.mxu0 0.0
        %573 = vmatpush2.msra.mxu0 0.0
        %574 = vmatprep.subr.mxu0 0.0
        %575 = vmatpush2.msra.mxu0 0.0
        %576 = vmatprep.subr.mxu0 0.0
        %577 = vmatpush2.msra.mxu0 0.0
        %578 = vmatprep.subr.mxu0 0.0
        %579 = vmatpush2.msra.mxu0 0.0
        %580 = vmatprep.subr.mxu0 0.0
        %581 = vmatpush2.msra.mxu0 0.0
        %582 = vmatprep.subr.mxu0 0.0
        %583 = vmatpush2.msra.mxu0 0.0
        %584 = vmatprep.subr.mxu0 0.0
        %585 = vmatpush2.msra.mxu0 0.0
        %586 = vmatprep.subr.mxu0 0.0
        %587 = vmatpush2.msra.mxu0 0.0
        %588 = vmatprep.subr.mxu0 0.0
        %589 = vmatpush2.msra.mxu0 0.0
        %590 = vmatprep.subr.mxu0 0.0
        %591 = vmatpush2.msra.mxu0 0.0
        %592 = vmatprep.subr.mxu0 0.0
        %593 = vmatpush2.msra.mxu0 0.0
        %594 = vmatprep.subr.mxu0 0.0
        %595 = vmatpush2.msra.mxu0 0.0
        %596 = vmatprep.subr.mxu0 0.0
        %597 = vmatpush2.msra.mxu0 0.0
        %598 = vmatprep.mubr.f32.mxu0 0.0
        %599 = vmatmul.mubr.f32.gmra.mxu0 %v479
        %v600 = vpop.f32.mrf.mxu0
        %v601 = vadd.f32 %v532, %v600
        %v602 = vpop.f32.mrf.mxu0
        %603 = vmatprep.mubr.f32.mxu0 0.0
        %604 = vmatmul.mubr.f32.gmra.mxu0 %v480
        %v605 = vpop.f32.mrf.mxu0
        %v606 = vadd.f32 %v532, %v605
        %v607 = vpop.f32.mrf.mxu0
        %608 = vmatprep.mubr.f32.mxu0 0.0
        %609 = vmatmul.mubr.f32.gmra.mxu0 %v481
        %v610 = vpop.f32.mrf.mxu0
        %v611 = vadd.f32 %v532, %v610
        %v612 = vpop.f32.mrf.mxu0
        %613 = vmatprep.mubr.f32.mxu0 0.0
        %614 = vmatmul.mubr.f32.gmra.mxu0 %v482
        %v615 = vpop.f32.mrf.mxu0
        %v616 = vadd.f32 %v532, %v615
        %v617 = vpop.f32.mrf.mxu0
        %618 = vmatprep.mubr.f32.mxu0 0.0
        %619 = vmatmul.mubr.f32.gmra.mxu0 %v483
        %v620 = vpop.f32.mrf.mxu0
        %v621 = vadd.f32 %v532, %v620
        %v622 = vpop.f32.mrf.mxu0
        %623 = vmatprep.mubr.f32.mxu0 0.0
        %624 = vmatmul.mubr.f32.gmra.mxu0 %v484
        %v625 = vpop.f32.mrf.mxu0
        %v626 = vadd.f32 %v532, %v625
        %v627 = vpop.f32.mrf.mxu0
        %628 = vmatprep.mubr.f32.mxu0 0.0
        %629 = vmatmul.mubr.f32.gmra.mxu0 %v485
        %v630 = vpop.f32.mrf.mxu0
        %v631 = vadd.f32 %v532, %v630
        %v632 = vpop.f32.mrf.mxu0
        %633 = vmatprep.mubr.f32.mxu0 0.0
        %634 = vmatmul.mubr.f32.gmra.mxu0 %v486
        %v635 = vpop.f32.mrf.mxu0
        %v636 = vadd.f32 %v532, %v635
        %v637 = vpop.f32.mrf.mxu0
        %638 = vmatprep.mubr.f32.mxu0 0.0
        %639 = vmatmul.mubr.f32.gmra.mxu0 %v487
        %v640 = vpop.f32.mrf.mxu0
        %v641 = vadd.f32 %v532, %v640
        %v642 = vpop.f32.mrf.mxu0
        %643 = vmatprep.mubr.f32.mxu0 0.0
        %644 = vmatmul.mubr.f32.gmra.mxu0 %v488
        %v645 = vpop.f32.mrf.mxu0
        %v646 = vadd.f32 %v532, %v645
        %v647 = vpop.f32.mrf.mxu0
        %648 = vmatprep.mubr.f32.mxu0 0.0
        %649 = vmatmul.mubr.f32.gmra.mxu0 %v489
        %v650 = vpop.f32.mrf.mxu0
        %v651 = vadd.f32 %v532, %v650
        %v652 = vpop.f32.mrf.mxu0
        %653 = vmatprep.mubr.f32.mxu0 0.0
        %654 = vmatmul.mubr.f32.gmra.mxu0 %v490
        %v655 = vpop.f32.mrf.mxu0
        %v656 = vadd.f32 %v532, %v655
        %v657 = vpop.f32.mrf.mxu0
        %658 = vmatprep.mubr.f32.mxu0 0.0
        %659 = vmatmul.mubr.f32.gmra.mxu0 %v491
        %v660 = vpop.f32.mrf.mxu0
        %v661 = vadd.f32 %v532, %v660
        %v662 = vpop.f32.mrf.mxu0
        %663 = vmatprep.mubr.f32.mxu0 0.0
        %664 = vmatmul.mubr.f32.gmra.mxu0 %v492
        %v665 = vpop.f32.mrf.mxu0
        %v666 = vadd.f32 %v532, %v665
        %v667 = vpop.f32.mrf.mxu0
        %668 = vmatprep.mubr.f32.mxu0 0.0
        %669 = vmatmul.mubr.f32.gmra.mxu0 %v493
        %v670 = vpop.f32.mrf.mxu0
        %v671 = vadd.f32 %v532, %v670
        %v672 = vpop.f32.mrf.mxu0
        %673 = vmatprep.mubr.f32.mxu0 0.0
        %674 = vmatmul.mubr.f32.gmra.mxu0 %v494
        %v675 = vpop.f32.mrf.mxu0
        %v676 = vadd.f32 %v532, %v675
        %v677 = vpop.f32.mrf.mxu0
        %678 = vmatprep.mubr.f32.mxu0 0.0
        %679 = vmatmul.mubr.f32.gmra.mxu0 %v495
        %v680 = vpop.f32.mrf.mxu0
        %v681 = vadd.f32 %v532, %v680
        %v682 = vpop.f32.mrf.mxu0
        %683 = vmatprep.mubr.f32.mxu0 0.0
        %684 = vmatmul.mubr.f32.gmra.mxu0 %v496
        %v685 = vpop.f32.mrf.mxu0
        %v686 = vadd.f32 %v532, %v685
        %v687 = vpop.f32.mrf.mxu0
        %688 = vmatprep.mubr.f32.mxu0 0.0
        %689 = vmatmul.mubr.f32.gmra.mxu0 %v497
        %v690 = vpop.f32.mrf.mxu0
        %v691 = vadd.f32 %v532, %v690
        %v692 = vpop.f32.mrf.mxu0
        %693 = vmatprep.mubr.f32.mxu0 0.0
        %694 = vmatmul.mubr.f32.gmra.mxu0 %v498
        %v695 = vpop.f32.mrf.mxu0
        %v696 = vadd.f32 %v532, %v695
        %v697 = vpop.f32.mrf.mxu0
        %698 = vmatprep.mubr.f32.mxu0 0.0
        %699 = vmatmul.mubr.f32.gmra.mxu0 %v499
        %v700 = vpop.f32.mrf.mxu0
        %v701 = vadd.f32 %v532, %v700
        %v702 = vpop.f32.mrf.mxu0
        %703 = vmatprep.mubr.f32.mxu0 0.0
        %704 = vmatmul.mubr.f32.gmra.mxu0 %v500
        %v705 = vpop.f32.mrf.mxu0
        %v706 = vadd.f32 %v532, %v705
        %v707 = vpop.f32.mrf.mxu0
        %708 = vmatprep.mubr.f32.mxu0 0.0
        %709 = vmatmul.mubr.f32.gmra.mxu0 %v501
        %v710 = vpop.f32.mrf.mxu0
        %v711 = vadd.f32 %v532, %v710
        %v712 = vpop.f32.mrf.mxu0
        %713 = vmatprep.mubr.f32.mxu0 0.0
        %714 = vmatmul.mubr.f32.gmra.mxu0 %v502
        %v715 = vpop.f32.mrf.mxu0
        %v716 = vadd.f32 %v532, %v715
        %v717 = vpop.f32.mrf.mxu0
        %718 = vmatprep.mubr.f32.mxu0 0.0
        %719 = vmatmul.mubr.f32.gmra.mxu0 %v503
        %v720 = vpop.f32.mrf.mxu0
        %v721 = vadd.f32 %v532, %v720
        %v722 = vpop.f32.mrf.mxu0
        %723 = vmatprep.mubr.f32.mxu0 0.0
        %724 = vmatmul.mubr.f32.gmra.mxu0 %v504
        %v725 = vpop.f32.mrf.mxu0
        %v726 = vadd.f32 %v532, %v725
        %v727 = vpop.f32.mrf.mxu0
        %728 = vmatprep.mubr.f32.mxu0 0.0
        %729 = vmatmul.mubr.f32.gmra.mxu0 %v505
        %v730 = vpop.f32.mrf.mxu0
        %v731 = vadd.f32 %v532, %v730
        %v732 = vpop.f32.mrf.mxu0
        %733 = vmatprep.mubr.f32.mxu0 0.0
        %734 = vmatmul.mubr.f32.gmra.mxu0 %v506
        %v735 = vpop.f32.mrf.mxu0
        %v736 = vadd.f32 %v532, %v735
        %v737 = vpop.f32.mrf.mxu0
        %738 = vmatprep.mubr.f32.mxu0 0.0
        %739 = vmatmul.mubr.f32.gmra.mxu0 %v507
        %v740 = vpop.f32.mrf.mxu0
        %v741 = vadd.f32 %v532, %v740
        %v742 = vpop.f32.mrf.mxu0
        %743 = vmatprep.mubr.f32.mxu0 0.0
        %744 = vmatmul.mubr.f32.gmra.mxu0 %v508
        %v745 = vpop.f32.mrf.mxu0
        %v746 = vadd.f32 %v532, %v745
        %v747 = vpop.f32.mrf.mxu0
        %748 = vmatprep.mubr.f32.mxu0 0.0
        %749 = vmatmul.mubr.f32.gmra.mxu0 %v509
        %v750 = vpop.f32.mrf.mxu0
        %v751 = vadd.f32 %v532, %v750
        %v752 = vpop.f32.mrf.mxu0
        %753 = vmatprep.mubr.f32.mxu0 0.0
        %754 = vmatmul.mubr.f32.gmra.mxu0 %v510
        %v755 = vpop.f32.mrf.mxu0
        %v756 = vadd.f32 %v532, %v755
        %v757 = vpop.f32.mrf.mxu0
        %758 = vdwg.mxu0
        %v759 = vmax.f32 %v601, 0.0
        %v760 = vmax.f32 %v606, 0.0
        %v761 = vmax.f32 %v611, 0.0
        %v762 = vmax.f32 %v616, 0.0
        %v763 = vmax.f32 %v621, 0.0
        %v764 = vmax.f32 %v626, 0.0
        %v765 = vmax.f32 %v631, 0.0
        %v766 = vmax.f32 %v636, 0.0
        %v767 = vmax.f32 %v641, 0.0
        %v768 = vmax.f32 %v646, 0.0
        %v769 = vmax.f32 %v651, 0.0
        %v770 = vmax.f32 %v656, 0.0
        %v771 = vmax.f32 %v661, 0.0
        %v772 = vmax.f32 %v666, 0.0
        %v773 = vmax.f32 %v671, 0.0
        %v774 = vmax.f32 %v676, 0.0
        %v775 = vmax.f32 %v681, 0.0
        %v776 = vmax.f32 %v686, 0.0
        %v777 = vmax.f32 %v691, 0.0
        %v778 = vmax.f32 %v696, 0.0
        %v779 = vmax.f32 %v701, 0.0
        %v780 = vmax.f32 %v706, 0.0
        %v781 = vmax.f32 %v711, 0.0
        %v782 = vmax.f32 %v716, 0.0
        %v783 = vmax.f32 %v721, 0.0
        %v784 = vmax.f32 %v726, 0.0
        %v785 = vmax.f32 %v731, 0.0
        %v786 = vmax.f32 %v736, 0.0
        %v787 = vmax.f32 %v741, 0.0
        %v788 = vmax.f32 %v746, 0.0
        %v789 = vmax.f32 %v751, 0.0
        %v790 = vmax.f32 %v756, 0.0
        %v791 = vld [vmem:[#allocation7] sm:$0xff]
        %v792 = vld [vmem:[#allocation7 + $0x8] sm:$0xff]
        %v793 = vld [vmem:[#allocation7 + $0x10] sm:$0xff]
        %v794 = vld [vmem:[#allocation7 + $0x18] sm:$0xff]
        %v795 = vld [vmem:[#allocation7 + $0x20] sm:$0xff]
        %v796 = vld [vmem:[#allocation7 + $0x28] sm:$0xff]
        %v797 = vld [vmem:[#allocation7 + $0x30] sm:$0xff]
        %v798 = vld [vmem:[#allocation7 + $0x38] sm:$0xff]
        %v799 = vld [vmem:[#allocation7 + $0x40] sm:$0xff]
        %v800 = vld [vmem:[#allocation7 + $0x48] sm:$0xff]
        %v801 = vld [vmem:[#allocation7 + $0x50] sm:$0xff]
        %v802 = vld [vmem:[#allocation7 + $0x58] sm:$0xff]
        %v803 = vld [vmem:[#allocation7 + $0x60] sm:$0xff]
        %v804 = vld [vmem:[#allocation7 + $0x68] sm:$0xff]
        %v805 = vld [vmem:[#allocation7 + $0x70] sm:$0xff]
        %v806 = vld [vmem:[#allocation7 + $0x78] sm:$0xff]
        %v807 = vld [vmem:[#allocation7 + $0x80] sm:$0xff]
        %v808 = vld [vmem:[#allocation7 + $0x88] sm:$0xff]
        %v809 = vld [vmem:[#allocation7 + $0x90] sm:$0xff]
        %v810 = vld [vmem:[#allocation7 + $0x98] sm:$0xff]
        %v811 = vld [vmem:[#allocation7 + $0xa0] sm:$0xff]
        %v812 = vld [vmem:[#allocation7 + $0xa8] sm:$0xff]
        %v813 = vld [vmem:[#allocation7 + $0xb0] sm:$0xff]
        %v814 = vld [vmem:[#allocation7 + $0xb8] sm:$0xff]
        %v815 = vld [vmem:[#allocation7 + $0xc0] sm:$0xff]
        %v816 = vld [vmem:[#allocation7 + $0xc8] sm:$0xff]
        %v817 = vld [vmem:[#allocation7 + $0xd0] sm:$0xff]
        %v818 = vld [vmem:[#allocation7 + $0xd8] sm:$0xff]
        %v819 = vld [vmem:[#allocation7 + $0xe0] sm:$0xff]
        %v820 = vld [vmem:[#allocation7 + $0xe8] sm:$0xff]
        %v821 = vld [vmem:[#allocation7 + $0xf0] sm:$0xff]
        %v822 = vld [vmem:[#allocation7 + $0xf8] sm:$0xff]
        %v823 = vld [vmem:[%s4] sm:$0x3]
        %v825 = vlaneseq
        %v826 = vshrl.u32 %v825, 7
        %v827 = vsub.s32 0, %v826
        %v828 = vrot.slane %v823, %v827
        %v829 = vlaneseq
        %v830 = vshrl.u32 %v829, 7
        %v831 = vsub.s32 1, %v830
        %v832 = vrot.slane %v823, %v831
        %835 = vmatprep.subr.mxu0 %v822
        %836 = vmatpush1.msra.mxu0 %v821
        %837 = vmatprep.subr.mxu0 %v820
        %838 = vmatpush1.msra.mxu0 %v819
        %839 = vmatprep.subr.mxu0 %v818
        %840 = vmatpush1.msra.mxu0 %v817
        %841 = vmatprep.subr.mxu0 %v816
        %842 = vmatpush1.msra.mxu0 %v815
        %843 = vmatprep.subr.mxu0 %v814
        %844 = vmatpush1.msra.mxu0 %v813
        %845 = vmatprep.subr.mxu0 %v812
        %846 = vmatpush1.msra.mxu0 %v811
        %847 = vmatprep.subr.mxu0 %v810
        %848 = vmatpush1.msra.mxu0 %v809
        %849 = vmatprep.subr.mxu0 %v808
        %850 = vmatpush1.msra.mxu0 %v807
        %851 = vmatprep.subr.mxu0 %v806
        %852 = vmatpush1.msra.mxu0 %v805
        %853 = vmatprep.subr.mxu0 %v804
        %854 = vmatpush1.msra.mxu0 %v803
        %855 = vmatprep.subr.mxu0 %v802
        %856 = vmatpush1.msra.mxu0 %v801
        %857 = vmatprep.subr.mxu0 %v800
        %858 = vmatpush1.msra.mxu0 %v799
        %859 = vmatprep.subr.mxu0 %v798
        %860 = vmatpush1.msra.mxu0 %v797
        %861 = vmatprep.subr.mxu0 %v796
        %862 = vmatpush1.msra.mxu0 %v795
        %863 = vmatprep.subr.mxu0 %v794
        %864 = vmatpush1.msra.mxu0 %v793
        %865 = vmatprep.subr.mxu0 %v792
        %866 = vmatpush1.msra.mxu0 %v791
        %867 = vmatprep.subr.mxu0 0.0
        %868 = vmatpush2.msra.mxu0 0.0
        %869 = vmatprep.subr.mxu0 0.0
        %870 = vmatpush2.msra.mxu0 0.0
        %871 = vmatprep.subr.mxu0 0.0
        %872 = vmatpush2.msra.mxu0 0.0
        %873 = vmatprep.subr.mxu0 0.0
        %874 = vmatpush2.msra.mxu0 0.0
        %875 = vmatprep.subr.mxu0 0.0
        %876 = vmatpush2.msra.mxu0 0.0
        %877 = vmatprep.subr.mxu0 0.0
        %878 = vmatpush2.msra.mxu0 0.0
        %879 = vmatprep.subr.mxu0 0.0
        %880 = vmatpush2.msra.mxu0 0.0
        %881 = vmatprep.subr.mxu0 0.0
        %882 = vmatpush2.msra.mxu0 0.0
        %883 = vmatprep.subr.mxu0 0.0
        %884 = vmatpush2.msra.mxu0 0.0
        %885 = vmatprep.subr.mxu0 0.0
        %886 = vmatpush2.msra.mxu0 0.0
        %887 = vmatprep.subr.mxu0 0.0
        %888 = vmatpush2.msra.mxu0 0.0
        %889 = vmatprep.subr.mxu0 0.0
        %890 = vmatpush2.msra.mxu0 0.0
        %891 = vmatprep.subr.mxu0 0.0
        %892 = vmatpush2.msra.mxu0 0.0
        %893 = vmatprep.subr.mxu0 0.0
        %894 = vmatpush2.msra.mxu0 0.0
        %895 = vmatprep.subr.mxu0 0.0
        %896 = vmatpush2.msra.mxu0 0.0
        %897 = vmatprep.subr.mxu0 0.0
        %898 = vmatpush2.msra.mxu0 0.0
        %899 = vmatprep.mubr.f32.mxu0 0.0
        %900 = vmatmul.mubr.f32.gmra.mxu0 %v759
        %v901 = vpop.f32.mrf.mxu0
        %v902 = vadd.f32 %v828, %v901
        %v903 = vpop.f32.mrf.mxu0
        %v904 = vadd.f32 %v832, %v903
        %905 = vmatprep.mubr.f32.mxu0 0.0
        %906 = vmatmul.mubr.f32.gmra.mxu0 %v760
        %v907 = vpop.f32.mrf.mxu0
        %v908 = vadd.f32 %v828, %v907
        %v909 = vpop.f32.mrf.mxu0
        %v910 = vadd.f32 %v832, %v909
        %911 = vmatprep.mubr.f32.mxu0 0.0
        %912 = vmatmul.mubr.f32.gmra.mxu0 %v761
        %v913 = vpop.f32.mrf.mxu0
        %v914 = vadd.f32 %v828, %v913
        %v915 = vpop.f32.mrf.mxu0
        %v916 = vadd.f32 %v832, %v915
        %917 = vmatprep.mubr.f32.mxu0 0.0
        %918 = vmatmul.mubr.f32.gmra.mxu0 %v762
        %v919 = vpop.f32.mrf.mxu0
        %v920 = vadd.f32 %v828, %v919
        %v921 = vpop.f32.mrf.mxu0
        %v922 = vadd.f32 %v832, %v921
        %923 = vmatprep.mubr.f32.mxu0 0.0
        %924 = vmatmul.mubr.f32.gmra.mxu0 %v763
        %v925 = vpop.f32.mrf.mxu0
        %v926 = vadd.f32 %v828, %v925
        %v927 = vpop.f32.mrf.mxu0
        %v928 = vadd.f32 %v832, %v927
        %929 = vmatprep.mubr.f32.mxu0 0.0
        %930 = vmatmul.mubr.f32.gmra.mxu0 %v764
        %v931 = vpop.f32.mrf.mxu0
        %v932 = vadd.f32 %v828, %v931
        %v933 = vpop.f32.mrf.mxu0
        %v934 = vadd.f32 %v832, %v933
        %935 = vmatprep.mubr.f32.mxu0 0.0
        %936 = vmatmul.mubr.f32.gmra.mxu0 %v765
        %v937 = vpop.f32.mrf.mxu0
        %v938 = vadd.f32 %v828, %v937
        %v939 = vpop.f32.mrf.mxu0
        %v940 = vadd.f32 %v832, %v939
        %941 = vmatprep.mubr.f32.mxu0 0.0
        %942 = vmatmul.mubr.f32.gmra.mxu0 %v766
        %v943 = vpop.f32.mrf.mxu0
        %v944 = vadd.f32 %v828, %v943
        %v945 = vpop.f32.mrf.mxu0
        %v946 = vadd.f32 %v832, %v945
        %947 = vmatprep.mubr.f32.mxu0 0.0
        %948 = vmatmul.mubr.f32.gmra.mxu0 %v767
        %v949 = vpop.f32.mrf.mxu0
        %v950 = vadd.f32 %v828, %v949
        %v951 = vpop.f32.mrf.mxu0
        %v952 = vadd.f32 %v832, %v951
        %953 = vmatprep.mubr.f32.mxu0 0.0
        %954 = vmatmul.mubr.f32.gmra.mxu0 %v768
        %v955 = vpop.f32.mrf.mxu0
        %v956 = vadd.f32 %v828, %v955
        %v957 = vpop.f32.mrf.mxu0
        %v958 = vadd.f32 %v832, %v957
        %959 = vmatprep.mubr.f32.mxu0 0.0
        %960 = vmatmul.mubr.f32.gmra.mxu0 %v769
        %v961 = vpop.f32.mrf.mxu0
        %v962 = vadd.f32 %v828, %v961
        %v963 = vpop.f32.mrf.mxu0
        %v964 = vadd.f32 %v832, %v963
        %965 = vmatprep.mubr.f32.mxu0 0.0
        %966 = vmatmul.mubr.f32.gmra.mxu0 %v770
        %v967 = vpop.f32.mrf.mxu0
        %v968 = vadd.f32 %v828, %v967
        %v969 = vpop.f32.mrf.mxu0
        %v970 = vadd.f32 %v832, %v969
        %971 = vmatprep.mubr.f32.mxu0 0.0
        %972 = vmatmul.mubr.f32.gmra.mxu0 %v771
        %v973 = vpop.f32.mrf.mxu0
        %v974 = vadd.f32 %v828, %v973
        %v975 = vpop.f32.mrf.mxu0
        %v976 = vadd.f32 %v832, %v975
        %977 = vmatprep.mubr.f32.mxu0 0.0
        %978 = vmatmul.mubr.f32.gmra.mxu0 %v772
        %v979 = vpop.f32.mrf.mxu0
        %v980 = vadd.f32 %v828, %v979
        %v981 = vpop.f32.mrf.mxu0
        %v982 = vadd.f32 %v832, %v981
        %983 = vmatprep.mubr.f32.mxu0 0.0
        %984 = vmatmul.mubr.f32.gmra.mxu0 %v773
        %v985 = vpop.f32.mrf.mxu0
        %v986 = vadd.f32 %v828, %v985
        %v987 = vpop.f32.mrf.mxu0
        %v988 = vadd.f32 %v832, %v987
        %989 = vmatprep.mubr.f32.mxu0 0.0
        %990 = vmatmul.mubr.f32.gmra.mxu0 %v774
        %v991 = vpop.f32.mrf.mxu0
        %v992 = vadd.f32 %v828, %v991
        %v993 = vpop.f32.mrf.mxu0
        %v994 = vadd.f32 %v832, %v993
        %995 = vmatprep.mubr.f32.mxu0 0.0
        %996 = vmatmul.mubr.f32.gmra.mxu0 %v775
        %v997 = vpop.f32.mrf.mxu0
        %v998 = vadd.f32 %v828, %v997
        %v999 = vpop.f32.mrf.mxu0
        %v1000 = vadd.f32 %v832, %v999
        %1001 = vmatprep.mubr.f32.mxu0 0.0
        %1002 = vmatmul.mubr.f32.gmra.mxu0 %v776
        %v1003 = vpop.f32.mrf.mxu0
        %v1004 = vadd.f32 %v828, %v1003
        %v1005 = vpop.f32.mrf.mxu0
        %v1006 = vadd.f32 %v832, %v1005
        %1007 = vmatprep.mubr.f32.mxu0 0.0
        %1008 = vmatmul.mubr.f32.gmra.mxu0 %v777
        %v1009 = vpop.f32.mrf.mxu0
        %v1010 = vadd.f32 %v828, %v1009
        %v1011 = vpop.f32.mrf.mxu0
        %v1012 = vadd.f32 %v832, %v1011
        %1013 = vmatprep.mubr.f32.mxu0 0.0
        %1014 = vmatmul.mubr.f32.gmra.mxu0 %v778
        %v1015 = vpop.f32.mrf.mxu0
        %v1016 = vadd.f32 %v828, %v1015
        %v1017 = vpop.f32.mrf.mxu0
        %v1018 = vadd.f32 %v832, %v1017
        %1019 = vmatprep.mubr.f32.mxu0 0.0
        %1020 = vmatmul.mubr.f32.gmra.mxu0 %v779
        %v1021 = vpop.f32.mrf.mxu0
        %v1022 = vadd.f32 %v828, %v1021
        %v1023 = vpop.f32.mrf.mxu0
        %v1024 = vadd.f32 %v832, %v1023
        %1025 = vmatprep.mubr.f32.mxu0 0.0
        %1026 = vmatmul.mubr.f32.gmra.mxu0 %v780
        %v1027 = vpop.f32.mrf.mxu0
        %v1028 = vadd.f32 %v828, %v1027
        %v1029 = vpop.f32.mrf.mxu0
        %v1030 = vadd.f32 %v832, %v1029
        %1031 = vmatprep.mubr.f32.mxu0 0.0
        %1032 = vmatmul.mubr.f32.gmra.mxu0 %v781
        %v1033 = vpop.f32.mrf.mxu0
        %v1034 = vadd.f32 %v828, %v1033
        %v1035 = vpop.f32.mrf.mxu0
        %v1036 = vadd.f32 %v832, %v1035
        %1037 = vmatprep.mubr.f32.mxu0 0.0
        %1038 = vmatmul.mubr.f32.gmra.mxu0 %v782
        %v1039 = vpop.f32.mrf.mxu0
        %v1040 = vadd.f32 %v828, %v1039
        %v1041 = vpop.f32.mrf.mxu0
        %v1042 = vadd.f32 %v832, %v1041
        %1043 = vmatprep.mubr.f32.mxu0 0.0
        %1044 = vmatmul.mubr.f32.gmra.mxu0 %v783
        %v1045 = vpop.f32.mrf.mxu0
        %v1046 = vadd.f32 %v828, %v1045
        %v1047 = vpop.f32.mrf.mxu0
        %v1048 = vadd.f32 %v832, %v1047
        %1049 = vmatprep.mubr.f32.mxu0 0.0
        %1050 = vmatmul.mubr.f32.gmra.mxu0 %v784
        %v1051 = vpop.f32.mrf.mxu0
        %v1052 = vadd.f32 %v828, %v1051
        %v1053 = vpop.f32.mrf.mxu0
        %v1054 = vadd.f32 %v832, %v1053
        %1055 = vmatprep.mubr.f32.mxu0 0.0
        %1056 = vmatmul.mubr.f32.gmra.mxu0 %v785
        %v1057 = vpop.f32.mrf.mxu0
        %v1058 = vadd.f32 %v828, %v1057
        %v1059 = vpop.f32.mrf.mxu0
        %v1060 = vadd.f32 %v832, %v1059
        %1061 = vmatprep.mubr.f32.mxu0 0.0
        %1062 = vmatmul.mubr.f32.gmra.mxu0 %v786
        %v1063 = vpop.f32.mrf.mxu0
        %v1064 = vadd.f32 %v828, %v1063
        %v1065 = vpop.f32.mrf.mxu0
        %v1066 = vadd.f32 %v832, %v1065
        %1067 = vmatprep.mubr.f32.mxu0 0.0
        %1068 = vmatmul.mubr.f32.gmra.mxu0 %v787
        %v1069 = vpop.f32.mrf.mxu0
        %v1070 = vadd.f32 %v828, %v1069
        %v1071 = vpop.f32.mrf.mxu0
        %v1072 = vadd.f32 %v832, %v1071
        %1073 = vmatprep.mubr.f32.mxu0 0.0
        %1074 = vmatmul.mubr.f32.gmra.mxu0 %v788
        %v1075 = vpop.f32.mrf.mxu0
        %v1076 = vadd.f32 %v828, %v1075
        %v1077 = vpop.f32.mrf.mxu0
        %v1078 = vadd.f32 %v832, %v1077
        %1079 = vmatprep.mubr.f32.mxu0 0.0
        %1080 = vmatmul.mubr.f32.gmra.mxu0 %v789
        %v1081 = vpop.f32.mrf.mxu0
        %v1082 = vadd.f32 %v828, %v1081
        %v1083 = vpop.f32.mrf.mxu0
        %v1084 = vadd.f32 %v832, %v1083
        %1085 = vmatprep.mubr.f32.mxu0 0.0
        %1086 = vmatmul.mubr.f32.gmra.mxu0 %v790
        %v1087 = vpop.f32.mrf.mxu0
        %v1088 = vadd.f32 %v828, %v1087
        %v1089 = vpop.f32.mrf.mxu0
        %v1090 = vadd.f32 %v832, %v1089
        %1091 = vdwg.mxu0
        %v1092 = vmul.f32 %v904, 1.442695
        %v1093 = vpow.pop %v1092
        %v1094 = vmul.f32 %v910, 1.442695
        %v1095 = vpow.pop %v1094
        %v1096 = vmul.f32 %v916, 1.442695
        %v1097 = vpow.pop %v1096
        %v1098 = vmul.f32 %v922, 1.442695
        %v1099 = vpow.pop %v1098
        %v1100 = vmul.f32 %v928, 1.442695
        %v1101 = vpow.pop %v1100
        %v1102 = vmul.f32 %v934, 1.442695
        %v1103 = vpow.pop %v1102
        %v1104 = vmul.f32 %v940, 1.442695
        %v1105 = vpow.pop %v1104
        %v1106 = vmul.f32 %v946, 1.442695
        %v1107 = vpow.pop %v1106
        %v1108 = vmul.f32 %v952, 1.442695
        %v1109 = vpow.pop %v1108
        %v1110 = vmul.f32 %v958, 1.442695
        %v1111 = vpow.pop %v1110
        %v1112 = vmul.f32 %v964, 1.442695
        %v1113 = vpow.pop %v1112
        %v1114 = vmul.f32 %v970, 1.442695
        %v1115 = vpow.pop %v1114
        %v1116 = vmul.f32 %v976, 1.442695
        %v1117 = vpow.pop %v1116
        %v1118 = vmul.f32 %v982, 1.442695
        %v1119 = vpow.pop %v1118
        %v1120 = vmul.f32 %v988, 1.442695
        %v1121 = vpow.pop %v1120
        %v1122 = vmul.f32 %v994, 1.442695
        %v1123 = vpow.pop %v1122
        %v1124 = vmul.f32 %v1000, 1.442695
        %v1125 = vpow.pop %v1124
        %v1126 = vmul.f32 %v1006, 1.442695
        %v1127 = vpow.pop %v1126
        %v1128 = vmul.f32 %v1012, 1.442695
        %v1129 = vpow.pop %v1128
        %v1130 = vmul.f32 %v1018, 1.442695
        %v1131 = vpow.pop %v1130
        %v1132 = vmul.f32 %v1024, 1.442695
        %v1133 = vpow.pop %v1132
        %v1134 = vmul.f32 %v1030, 1.442695
        %v1135 = vpow.pop %v1134
        %v1136 = vmul.f32 %v1036, 1.442695
        %v1137 = vpow.pop %v1136
        %v1138 = vmul.f32 %v1042, 1.442695
        %v1139 = vpow.pop %v1138
        %v1140 = vmul.f32 %v1048, 1.442695
        %v1141 = vpow.pop %v1140
        %v1142 = vmul.f32 %v1054, 1.442695
        %v1143 = vpow.pop %v1142
        %v1144 = vmul.f32 %v1060, 1.442695
        %v1145 = vpow.pop %v1144
        %v1146 = vmul.f32 %v1066, 1.442695
        %v1147 = vpow.pop %v1146
        %v1148 = vmul.f32 %v1072, 1.442695
        %v1149 = vpow.pop %v1148
        %v1150 = vmul.f32 %v1078, 1.442695
        %v1151 = vpow.pop %v1150
        %v1152 = vmul.f32 %v1084, 1.442695
        %v1153 = vpow.pop %v1152
        %v1154 = vmul.f32 %v1090, 1.442695
        %v1155 = vpow.pop %v1154
        %v1156 = vld [vmem:[%s434] sm:$0xff]
        %v1157 = vld [vmem:[%s434 + $0x8] sm:$0xff]
        %v1158 = vld [vmem:[%s434 + $0x10] sm:$0xff]
        %v1159 = vld [vmem:[%s434 + $0x18] sm:$0xff]
        %v1160 = vld [vmem:[%s434 + $0x20] sm:$0xff]
        %v1161 = vld [vmem:[%s434 + $0x28] sm:$0xff]
        %v1162 = vld [vmem:[%s434 + $0x30] sm:$0xff]
        %v1163 = vld [vmem:[%s434 + $0x38] sm:$0xff]
        %v1164 = vld [vmem:[%s434 + $0x40] sm:$0xff]
        %v1165 = vld [vmem:[%s434 + $0x48] sm:$0xff]
        %v1166 = vld [vmem:[%s434 + $0x50] sm:$0xff]
        %v1167 = vld [vmem:[%s434 + $0x58] sm:$0xff]
        %v1168 = vld [vmem:[%s434 + $0x60] sm:$0xff]
        %v1169 = vld [vmem:[%s434 + $0x68] sm:$0xff]
        %v1170 = vld [vmem:[%s434 + $0x70] sm:$0xff]
        %v1171 = vld [vmem:[%s434 + $0x78] sm:$0xff]
        %v1172 = vld [vmem:[%s434 + $0x80] sm:$0xff]
        %v1173 = vld [vmem:[%s434 + $0x88] sm:$0xff]
        %v1174 = vld [vmem:[%s434 + $0x90] sm:$0xff]
        %v1175 = vld [vmem:[%s434 + $0x98] sm:$0xff]
        %v1176 = vld [vmem:[%s434 + $0xa0] sm:$0xff]
        %v1177 = vld [vmem:[%s434 + $0xa8] sm:$0xff]
        %v1178 = vld [vmem:[%s434 + $0xb0] sm:$0xff]
        %v1179 = vld [vmem:[%s434 + $0xb8] sm:$0xff]
        %v1180 = vld [vmem:[%s434 + $0xc0] sm:$0xff]
        %v1181 = vld [vmem:[%s434 + $0xc8] sm:$0xff]
        %v1182 = vld [vmem:[%s434 + $0xd0] sm:$0xff]
        %v1183 = vld [vmem:[%s434 + $0xd8] sm:$0xff]
        %v1184 = vld [vmem:[%s434 + $0xe0] sm:$0xff]
        %v1185 = vld [vmem:[%s434 + $0xe8] sm:$0xff]
        %v1186 = vld [vmem:[%s434 + $0xf0] sm:$0xff]
        %v1187 = vld [vmem:[%s434 + $0xf8] sm:$0xff]
        %v1188 = vmul.f32 %v1093, %v1156
        %v1189 = vmul.f32 %v1095, %v1157
        %v1190 = vmul.f32 %v1097, %v1158
        %v1191 = vmul.f32 %v1099, %v1159
        %v1192 = vmul.f32 %v1101, %v1160
        %v1193 = vmul.f32 %v1103, %v1161
        %v1194 = vmul.f32 %v1105, %v1162
        %v1195 = vmul.f32 %v1107, %v1163
        %v1196 = vmul.f32 %v1109, %v1164
        %v1197 = vmul.f32 %v1111, %v1165
        %v1198 = vmul.f32 %v1113, %v1166
        %v1199 = vmul.f32 %v1115, %v1167
        %v1200 = vmul.f32 %v1117, %v1168
        %v1201 = vmul.f32 %v1119, %v1169
        %v1202 = vmul.f32 %v1121, %v1170
        %v1203 = vmul.f32 %v1123, %v1171
        %v1204 = vmul.f32 %v1125, %v1172
        %v1205 = vmul.f32 %v1127, %v1173
        %v1206 = vmul.f32 %v1129, %v1174
        %v1207 = vmul.f32 %v1131, %v1175
        %v1208 = vmul.f32 %v1133, %v1176
        %v1209 = vmul.f32 %v1135, %v1177
        %v1210 = vmul.f32 %v1137, %v1178
        %v1211 = vmul.f32 %v1139, %v1179
        %v1212 = vmul.f32 %v1141, %v1180
        %v1213 = vmul.f32 %v1143, %v1181
        %v1214 = vmul.f32 %v1145, %v1182
        %v1215 = vmul.f32 %v1147, %v1183
        %v1216 = vmul.f32 %v1149, %v1184
        %v1217 = vmul.f32 %v1151, %v1185
        %v1218 = vmul.f32 %v1153, %v1186
        %v1219 = vmul.f32 %v1155, %v1187
        %v1220 = vadd.f32 %v902, %v1188
        %v1221 = vadd.f32 %v908, %v1189
        %v1222 = vadd.f32 %v914, %v1190
        %v1223 = vadd.f32 %v920, %v1191
        %v1224 = vadd.f32 %v926, %v1192
        %v1225 = vadd.f32 %v932, %v1193
        %v1226 = vadd.f32 %v938, %v1194
        %v1227 = vadd.f32 %v944, %v1195
        %v1228 = vadd.f32 %v950, %v1196
        %v1229 = vadd.f32 %v956, %v1197
        %v1230 = vadd.f32 %v962, %v1198
        %v1231 = vadd.f32 %v968, %v1199
        %v1232 = vadd.f32 %v974, %v1200
        %v1233 = vadd.f32 %v980, %v1201
        %v1234 = vadd.f32 %v986, %v1202
        %v1235 = vadd.f32 %v992, %v1203
        %v1236 = vadd.f32 %v998, %v1204
        %v1237 = vadd.f32 %v1004, %v1205
        %v1238 = vadd.f32 %v1010, %v1206
        %v1239 = vadd.f32 %v1016, %v1207
        %v1240 = vadd.f32 %v1022, %v1208
        %v1241 = vadd.f32 %v1028, %v1209
        %v1242 = vadd.f32 %v1034, %v1210
        %v1243 = vadd.f32 %v1040, %v1211
        %v1244 = vadd.f32 %v1046, %v1212
        %v1245 = vadd.f32 %v1052, %v1213
        %v1246 = vadd.f32 %v1058, %v1214
        %v1247 = vadd.f32 %v1064, %v1215
        %v1248 = vadd.f32 %v1070, %v1216
        %v1249 = vadd.f32 %v1076, %v1217
        %v1250 = vadd.f32 %v1082, %v1218
        %v1251 = vadd.f32 %v1088, %v1219
        %v1252 = vld [vmem:[#allocation8] sm:$0xff]
        %v1253 = vld [vmem:[#allocation8 + $0x8] sm:$0xff]
        %v1254 = vld [vmem:[#allocation8 + $0x10] sm:$0xff]
        %v1255 = vld [vmem:[#allocation8 + $0x18] sm:$0xff]
        %v1256 = vld [vmem:[#allocation8 + $0x20] sm:$0xff]
        %v1257 = vld [vmem:[#allocation8 + $0x28] sm:$0xff]
        %v1258 = vld [vmem:[#allocation8 + $0x30] sm:$0xff]
        %v1259 = vld [vmem:[#allocation8 + $0x38] sm:$0xff]
        %v1260 = vld [vmem:[#allocation8 + $0x40] sm:$0xff]
        %v1261 = vld [vmem:[#allocation8 + $0x48] sm:$0xff]
        %v1262 = vld [vmem:[#allocation8 + $0x50] sm:$0xff]
        %v1263 = vld [vmem:[#allocation8 + $0x58] sm:$0xff]
        %v1264 = vld [vmem:[#allocation8 + $0x60] sm:$0xff]
        %v1265 = vld [vmem:[#allocation8 + $0x68] sm:$0xff]
        %v1266 = vld [vmem:[#allocation8 + $0x70] sm:$0xff]
        %v1267 = vld [vmem:[#allocation8 + $0x78] sm:$0xff]
        %v1268 = vld [vmem:[%s6] sm:$0x1]
        %v1270 = vlaneseq
        %v1271 = vshrl.u32 %v1270, 7
        %v1272 = vsub.s32 0, %v1271
        %v1273 = vrot.slane %v1268, %v1272
        %1275 = vmatprep.subr.mxu0 0.0
        %1276 = vmatpush1.msra.mxu0 %v1267
        %1277 = vmatprep.subr.mxu0 0.0
        %1278 = vmatpush1.msra.mxu0 %v1266
        %1279 = vmatprep.subr.mxu0 0.0
        %1280 = vmatpush1.msra.mxu0 %v1265
        %1281 = vmatprep.subr.mxu0 0.0
        %1282 = vmatpush1.msra.mxu0 %v1264
        %1283 = vmatprep.subr.mxu0 0.0
        %1284 = vmatpush1.msra.mxu0 %v1263
        %1285 = vmatprep.subr.mxu0 0.0
        %1286 = vmatpush1.msra.mxu0 %v1262
        %1287 = vmatprep.subr.mxu0 0.0
        %1288 = vmatpush1.msra.mxu0 %v1261
        %1289 = vmatprep.subr.mxu0 0.0
        %1290 = vmatpush1.msra.mxu0 %v1260
        %1291 = vmatprep.subr.mxu0 0.0
        %1292 = vmatpush1.msra.mxu0 %v1259
        %1293 = vmatprep.subr.mxu0 0.0
        %1294 = vmatpush1.msra.mxu0 %v1258
        %1295 = vmatprep.subr.mxu0 0.0
        %1296 = vmatpush1.msra.mxu0 %v1257
        %1297 = vmatprep.subr.mxu0 0.0
        %1298 = vmatpush1.msra.mxu0 %v1256
        %1299 = vmatprep.subr.mxu0 0.0
        %1300 = vmatpush1.msra.mxu0 %v1255
        %1301 = vmatprep.subr.mxu0 0.0
        %1302 = vmatpush1.msra.mxu0 %v1254
        %1303 = vmatprep.subr.mxu0 0.0
        %1304 = vmatpush1.msra.mxu0 %v1253
        %1305 = vmatprep.subr.mxu0 0.0
        %1306 = vmatpush1.msra.mxu0 %v1252
        %1307 = vmatprep.subr.mxu0 0.0
        %1308 = vmatpush2.msra.mxu0 0.0
        %1309 = vmatprep.subr.mxu0 0.0
        %1310 = vmatpush2.msra.mxu0 0.0
        %1311 = vmatprep.subr.mxu0 0.0
        %1312 = vmatpush2.msra.mxu0 0.0
        %1313 = vmatprep.subr.mxu0 0.0
        %1314 = vmatpush2.msra.mxu0 0.0
        %1315 = vmatprep.subr.mxu0 0.0
        %1316 = vmatpush2.msra.mxu0 0.0
        %1317 = vmatprep.subr.mxu0 0.0
        %1318 = vmatpush2.msra.mxu0 0.0
        %1319 = vmatprep.subr.mxu0 0.0
        %1320 = vmatpush2.msra.mxu0 0.0
        %1321 = vmatprep.subr.mxu0 0.0
        %1322 = vmatpush2.msra.mxu0 0.0
        %1323 = vmatprep.subr.mxu0 0.0
        %1324 = vmatpush2.msra.mxu0 0.0
        %1325 = vmatprep.subr.mxu0 0.0
        %1326 = vmatpush2.msra.mxu0 0.0
        %1327 = vmatprep.subr.mxu0 0.0
        %1328 = vmatpush2.msra.mxu0 0.0
        %1329 = vmatprep.subr.mxu0 0.0
        %1330 = vmatpush2.msra.mxu0 0.0
        %1331 = vmatprep.subr.mxu0 0.0
        %1332 = vmatpush2.msra.mxu0 0.0
        %1333 = vmatprep.subr.mxu0 0.0
        %1334 = vmatpush2.msra.mxu0 0.0
        %1335 = vmatprep.subr.mxu0 0.0
        %1336 = vmatpush2.msra.mxu0 0.0
        %1337 = vmatprep.subr.mxu0 0.0
        %1338 = vmatpush2.msra.mxu0 0.0
        %1339 = vmatprep.mubr.f32.mxu0 0.0
        %1340 = vmatmul.mubr.f32.gmra.mxu0 %v1220
        %v1341 = vpop.f32.mrf.mxu0
        %v1342 = vadd.f32 %v1273, %v1341
        %v1343 = vpop.f32.mrf.mxu0
        %1344 = vmatprep.mubr.f32.mxu0 0.0
        %1345 = vmatmul.mubr.f32.gmra.mxu0 %v1221
        %v1346 = vpop.f32.mrf.mxu0
        %v1347 = vadd.f32 %v1273, %v1346
        %v1348 = vpop.f32.mrf.mxu0
        %1349 = vmatprep.mubr.f32.mxu0 0.0
        %1350 = vmatmul.mubr.f32.gmra.mxu0 %v1222
        %v1351 = vpop.f32.mrf.mxu0
        %v1352 = vadd.f32 %v1273, %v1351
        %v1353 = vpop.f32.mrf.mxu0
        %1354 = vmatprep.mubr.f32.mxu0 0.0
        %1355 = vmatmul.mubr.f32.gmra.mxu0 %v1223
        %v1356 = vpop.f32.mrf.mxu0
        %v1357 = vadd.f32 %v1273, %v1356
        %v1358 = vpop.f32.mrf.mxu0
        %1359 = vmatprep.mubr.f32.mxu0 0.0
        %1360 = vmatmul.mubr.f32.gmra.mxu0 %v1224
        %v1361 = vpop.f32.mrf.mxu0
        %v1362 = vadd.f32 %v1273, %v1361
        %v1363 = vpop.f32.mrf.mxu0
        %1364 = vmatprep.mubr.f32.mxu0 0.0
        %1365 = vmatmul.mubr.f32.gmra.mxu0 %v1225
        %v1366 = vpop.f32.mrf.mxu0
        %v1367 = vadd.f32 %v1273, %v1366
        %v1368 = vpop.f32.mrf.mxu0
        %1369 = vmatprep.mubr.f32.mxu0 0.0
        %1370 = vmatmul.mubr.f32.gmra.mxu0 %v1226
        %v1371 = vpop.f32.mrf.mxu0
        %v1372 = vadd.f32 %v1273, %v1371
        %v1373 = vpop.f32.mrf.mxu0
        %1374 = vmatprep.mubr.f32.mxu0 0.0
        %1375 = vmatmul.mubr.f32.gmra.mxu0 %v1227
        %v1376 = vpop.f32.mrf.mxu0
        %v1377 = vadd.f32 %v1273, %v1376
        %v1378 = vpop.f32.mrf.mxu0
        %1379 = vmatprep.mubr.f32.mxu0 0.0
        %1380 = vmatmul.mubr.f32.gmra.mxu0 %v1228
        %v1381 = vpop.f32.mrf.mxu0
        %v1382 = vadd.f32 %v1273, %v1381
        %v1383 = vpop.f32.mrf.mxu0
        %1384 = vmatprep.mubr.f32.mxu0 0.0
        %1385 = vmatmul.mubr.f32.gmra.mxu0 %v1229
        %v1386 = vpop.f32.mrf.mxu0
        %v1387 = vadd.f32 %v1273, %v1386
        %v1388 = vpop.f32.mrf.mxu0
        %1389 = vmatprep.mubr.f32.mxu0 0.0
        %1390 = vmatmul.mubr.f32.gmra.mxu0 %v1230
        %v1391 = vpop.f32.mrf.mxu0
        %v1392 = vadd.f32 %v1273, %v1391
        %v1393 = vpop.f32.mrf.mxu0
        %1394 = vmatprep.mubr.f32.mxu0 0.0
        %1395 = vmatmul.mubr.f32.gmra.mxu0 %v1231
        %v1396 = vpop.f32.mrf.mxu0
        %v1397 = vadd.f32 %v1273, %v1396
        %v1398 = vpop.f32.mrf.mxu0
        %1399 = vmatprep.mubr.f32.mxu0 0.0
        %1400 = vmatmul.mubr.f32.gmra.mxu0 %v1232
        %v1401 = vpop.f32.mrf.mxu0
        %v1402 = vadd.f32 %v1273, %v1401
        %v1403 = vpop.f32.mrf.mxu0
        %1404 = vmatprep.mubr.f32.mxu0 0.0
        %1405 = vmatmul.mubr.f32.gmra.mxu0 %v1233
        %v1406 = vpop.f32.mrf.mxu0
        %v1407 = vadd.f32 %v1273, %v1406
        %v1408 = vpop.f32.mrf.mxu0
        %1409 = vmatprep.mubr.f32.mxu0 0.0
        %1410 = vmatmul.mubr.f32.gmra.mxu0 %v1234
        %v1411 = vpop.f32.mrf.mxu0
        %v1412 = vadd.f32 %v1273, %v1411
        %v1413 = vpop.f32.mrf.mxu0
        %1414 = vmatprep.mubr.f32.mxu0 0.0
        %1415 = vmatmul.mubr.f32.gmra.mxu0 %v1235
        %v1416 = vpop.f32.mrf.mxu0
        %v1417 = vadd.f32 %v1273, %v1416
        %v1418 = vpop.f32.mrf.mxu0
        %1419 = vmatprep.mubr.f32.mxu0 0.0
        %1420 = vmatmul.mubr.f32.gmra.mxu0 %v1236
        %v1421 = vpop.f32.mrf.mxu0
        %v1422 = vadd.f32 %v1273, %v1421
        %v1423 = vpop.f32.mrf.mxu0
        %1424 = vmatprep.mubr.f32.mxu0 0.0
        %1425 = vmatmul.mubr.f32.gmra.mxu0 %v1237
        %v1426 = vpop.f32.mrf.mxu0
        %v1427 = vadd.f32 %v1273, %v1426
        %v1428 = vpop.f32.mrf.mxu0
        %1429 = vmatprep.mubr.f32.mxu0 0.0
        %1430 = vmatmul.mubr.f32.gmra.mxu0 %v1238
        %v1431 = vpop.f32.mrf.mxu0
        %v1432 = vadd.f32 %v1273, %v1431
        %v1433 = vpop.f32.mrf.mxu0
        %1434 = vmatprep.mubr.f32.mxu0 0.0
        %1435 = vmatmul.mubr.f32.gmra.mxu0 %v1239
        %v1436 = vpop.f32.mrf.mxu0
        %v1437 = vadd.f32 %v1273, %v1436
        %v1438 = vpop.f32.mrf.mxu0
        %1439 = vmatprep.mubr.f32.mxu0 0.0
        %1440 = vmatmul.mubr.f32.gmra.mxu0 %v1240
        %v1441 = vpop.f32.mrf.mxu0
        %v1442 = vadd.f32 %v1273, %v1441
        %v1443 = vpop.f32.mrf.mxu0
        %1444 = vmatprep.mubr.f32.mxu0 0.0
        %1445 = vmatmul.mubr.f32.gmra.mxu0 %v1241
        %v1446 = vpop.f32.mrf.mxu0
        %v1447 = vadd.f32 %v1273, %v1446
        %v1448 = vpop.f32.mrf.mxu0
        %1449 = vmatprep.mubr.f32.mxu0 0.0
        %1450 = vmatmul.mubr.f32.gmra.mxu0 %v1242
        %v1451 = vpop.f32.mrf.mxu0
        %v1452 = vadd.f32 %v1273, %v1451
        %v1453 = vpop.f32.mrf.mxu0
        %1454 = vmatprep.mubr.f32.mxu0 0.0
        %1455 = vmatmul.mubr.f32.gmra.mxu0 %v1243
        %v1456 = vpop.f32.mrf.mxu0
        %v1457 = vadd.f32 %v1273, %v1456
        %v1458 = vpop.f32.mrf.mxu0
        %1459 = vmatprep.mubr.f32.mxu0 0.0
        %1460 = vmatmul.mubr.f32.gmra.mxu0 %v1244
        %v1461 = vpop.f32.mrf.mxu0
        %v1462 = vadd.f32 %v1273, %v1461
        %v1463 = vpop.f32.mrf.mxu0
        %1464 = vmatprep.mubr.f32.mxu0 0.0
        %1465 = vmatmul.mubr.f32.gmra.mxu0 %v1245
        %v1466 = vpop.f32.mrf.mxu0
        %v1467 = vadd.f32 %v1273, %v1466
        %v1468 = vpop.f32.mrf.mxu0
        %1469 = vmatprep.mubr.f32.mxu0 0.0
        %1470 = vmatmul.mubr.f32.gmra.mxu0 %v1246
        %v1471 = vpop.f32.mrf.mxu0
        %v1472 = vadd.f32 %v1273, %v1471
        %v1473 = vpop.f32.mrf.mxu0
        %1474 = vmatprep.mubr.f32.mxu0 0.0
        %1475 = vmatmul.mubr.f32.gmra.mxu0 %v1247
        %v1476 = vpop.f32.mrf.mxu0
        %v1477 = vadd.f32 %v1273, %v1476
        %v1478 = vpop.f32.mrf.mxu0
        %1479 = vmatprep.mubr.f32.mxu0 0.0
        %1480 = vmatmul.mubr.f32.gmra.mxu0 %v1248
        %v1481 = vpop.f32.mrf.mxu0
        %v1482 = vadd.f32 %v1273, %v1481
        %v1483 = vpop.f32.mrf.mxu0
        %1484 = vmatprep.mubr.f32.mxu0 0.0
        %1485 = vmatmul.mubr.f32.gmra.mxu0 %v1249
        %v1486 = vpop.f32.mrf.mxu0
        %v1487 = vadd.f32 %v1273, %v1486
        %v1488 = vpop.f32.mrf.mxu0
        %1489 = vmatprep.mubr.f32.mxu0 0.0
        %1490 = vmatmul.mubr.f32.gmra.mxu0 %v1250
        %v1491 = vpop.f32.mrf.mxu0
        %v1492 = vadd.f32 %v1273, %v1491
        %v1493 = vpop.f32.mrf.mxu0
        %1494 = vmatprep.mubr.f32.mxu0 0.0
        %1495 = vmatmul.mubr.f32.gmra.mxu0 %v1251
        %v1496 = vpop.f32.mrf.mxu0
        %v1497 = vadd.f32 %v1273, %v1496
        %v1498 = vpop.f32.mrf.mxu0
        %1499 = vdwg.mxu0
        %v1500 = vld [vmem:[#allocation10] sm:$0xff]
        %v1501 = vld [vmem:[#allocation10 + $0x8] sm:$0xff]
        %v1502 = vld [vmem:[#allocation10 + $0x10] sm:$0xff]
        %v1503 = vld [vmem:[#allocation10 + $0x18] sm:$0xff]
        %v1504 = vld [vmem:[#allocation10 + $0x20] sm:$0xff]
        %v1505 = vld [vmem:[#allocation10 + $0x28] sm:$0xff]
        %v1506 = vld [vmem:[#allocation10 + $0x30] sm:$0xff]
        %v1507 = vld [vmem:[#allocation10 + $0x38] sm:$0xff]
        %v1508 = vld [vmem:[#allocation10 + $0x40] sm:$0xff]
        %v1509 = vld [vmem:[#allocation10 + $0x48] sm:$0xff]
        %v1510 = vld [vmem:[#allocation10 + $0x50] sm:$0xff]
        %v1511 = vld [vmem:[#allocation10 + $0x58] sm:$0xff]
        %v1512 = vld [vmem:[#allocation10 + $0x60] sm:$0xff]
        %v1513 = vld [vmem:[#allocation10 + $0x68] sm:$0xff]
        %v1514 = vld [vmem:[#allocation10 + $0x70] sm:$0xff]
        %v1515 = vld [vmem:[#allocation10 + $0x78] sm:$0xff]
        %v1516 = vld [vmem:[%s8] sm:$0x1]
        %v1518 = vlaneseq
        %v1519 = vshrl.u32 %v1518, 7
        %v1520 = vsub.s32 0, %v1519
        %v1521 = vrot.slane %v1516, %v1520
        %1523 = vmatprep.subr.mxu0 0.0
        %1524 = vmatpush1.msra.mxu0 %v1515
        %1525 = vmatprep.subr.mxu0 0.0
        %1526 = vmatpush1.msra.mxu0 %v1514
        %1527 = vmatprep.subr.mxu0 0.0
        %1528 = vmatpush1.msra.mxu0 %v1513
        %1529 = vmatprep.subr.mxu0 0.0
        %1530 = vmatpush1.msra.mxu0 %v1512
        %1531 = vmatprep.subr.mxu0 0.0
        %1532 = vmatpush1.msra.mxu0 %v1511
        %1533 = vmatprep.subr.mxu0 0.0
        %1534 = vmatpush1.msra.mxu0 %v1510
        %1535 = vmatprep.subr.mxu0 0.0
        %1536 = vmatpush1.msra.mxu0 %v1509
        %1537 = vmatprep.subr.mxu0 0.0
        %1538 = vmatpush1.msra.mxu0 %v1508
        %1539 = vmatprep.subr.mxu0 0.0
        %1540 = vmatpush1.msra.mxu0 %v1507
        %1541 = vmatprep.subr.mxu0 0.0
        %1542 = vmatpush1.msra.mxu0 %v1506
        %1543 = vmatprep.subr.mxu0 0.0
        %1544 = vmatpush1.msra.mxu0 %v1505
        %1545 = vmatprep.subr.mxu0 0.0
        %1546 = vmatpush1.msra.mxu0 %v1504
        %1547 = vmatprep.subr.mxu0 0.0
        %1548 = vmatpush1.msra.mxu0 %v1503
        %1549 = vmatprep.subr.mxu0 0.0
        %1550 = vmatpush1.msra.mxu0 %v1502
        %1551 = vmatprep.subr.mxu0 0.0
        %1552 = vmatpush1.msra.mxu0 %v1501
        %1553 = vmatprep.subr.mxu0 0.0
        %1554 = vmatpush1.msra.mxu0 %v1500
        %1555 = vmatprep.subr.mxu0 0.0
        %1556 = vmatpush2.msra.mxu0 0.0
        %1557 = vmatprep.subr.mxu0 0.0
        %1558 = vmatpush2.msra.mxu0 0.0
        %1559 = vmatprep.subr.mxu0 0.0
        %1560 = vmatpush2.msra.mxu0 0.0
        %1561 = vmatprep.subr.mxu0 0.0
        %1562 = vmatpush2.msra.mxu0 0.0
        %1563 = vmatprep.subr.mxu0 0.0
        %1564 = vmatpush2.msra.mxu0 0.0
        %1565 = vmatprep.subr.mxu0 0.0
        %1566 = vmatpush2.msra.mxu0 0.0
        %1567 = vmatprep.subr.mxu0 0.0
        %1568 = vmatpush2.msra.mxu0 0.0
        %1569 = vmatprep.subr.mxu0 0.0
        %1570 = vmatpush2.msra.mxu0 0.0
        %1571 = vmatprep.subr.mxu0 0.0
        %1572 = vmatpush2.msra.mxu0 0.0
        %1573 = vmatprep.subr.mxu0 0.0
        %1574 = vmatpush2.msra.mxu0 0.0
        %1575 = vmatprep.subr.mxu0 0.0
        %1576 = vmatpush2.msra.mxu0 0.0
        %1577 = vmatprep.subr.mxu0 0.0
        %1578 = vmatpush2.msra.mxu0 0.0
        %1579 = vmatprep.subr.mxu0 0.0
        %1580 = vmatpush2.msra.mxu0 0.0
        %1581 = vmatprep.subr.mxu0 0.0
        %1582 = vmatpush2.msra.mxu0 0.0
        %1583 = vmatprep.subr.mxu0 0.0
        %1584 = vmatpush2.msra.mxu0 0.0
        %1585 = vmatprep.subr.mxu0 0.0
        %1586 = vmatpush2.msra.mxu0 0.0
        %1587 = vmatprep.mubr.f32.mxu0 0.0
        %1588 = vmatmul.mubr.f32.gmra.mxu0 %v1342
        %v1589 = vpop.f32.mrf.mxu0
        %v1590 = vadd.f32 %v1521, %v1589
        %v1591 = vpop.f32.mrf.mxu0
        %1592 = vmatprep.mubr.f32.mxu0 0.0
        %1593 = vmatmul.mubr.f32.gmra.mxu0 %v1347
        %v1594 = vpop.f32.mrf.mxu0
        %v1595 = vadd.f32 %v1521, %v1594
        %v1596 = vpop.f32.mrf.mxu0
        %1597 = vmatprep.mubr.f32.mxu0 0.0
        %1598 = vmatmul.mubr.f32.gmra.mxu0 %v1352
        %v1599 = vpop.f32.mrf.mxu0
        %v1600 = vadd.f32 %v1521, %v1599
        %v1601 = vpop.f32.mrf.mxu0
        %1602 = vmatprep.mubr.f32.mxu0 0.0
        %1603 = vmatmul.mubr.f32.gmra.mxu0 %v1357
        %v1604 = vpop.f32.mrf.mxu0
        %v1605 = vadd.f32 %v1521, %v1604
        %v1606 = vpop.f32.mrf.mxu0
        %1607 = vmatprep.mubr.f32.mxu0 0.0
        %1608 = vmatmul.mubr.f32.gmra.mxu0 %v1362
        %v1609 = vpop.f32.mrf.mxu0
        %v1610 = vadd.f32 %v1521, %v1609
        %v1611 = vpop.f32.mrf.mxu0
        %1612 = vmatprep.mubr.f32.mxu0 0.0
        %1613 = vmatmul.mubr.f32.gmra.mxu0 %v1367
        %v1614 = vpop.f32.mrf.mxu0
        %v1615 = vadd.f32 %v1521, %v1614
        %v1616 = vpop.f32.mrf.mxu0
        %1617 = vmatprep.mubr.f32.mxu0 0.0
        %1618 = vmatmul.mubr.f32.gmra.mxu0 %v1372
        %v1619 = vpop.f32.mrf.mxu0
        %v1620 = vadd.f32 %v1521, %v1619
        %v1621 = vpop.f32.mrf.mxu0
        %1622 = vmatprep.mubr.f32.mxu0 0.0
        %1623 = vmatmul.mubr.f32.gmra.mxu0 %v1377
        %v1624 = vpop.f32.mrf.mxu0
        %v1625 = vadd.f32 %v1521, %v1624
        %v1626 = vpop.f32.mrf.mxu0
        %1627 = vmatprep.mubr.f32.mxu0 0.0
        %1628 = vmatmul.mubr.f32.gmra.mxu0 %v1382
        %v1629 = vpop.f32.mrf.mxu0
        %v1630 = vadd.f32 %v1521, %v1629
        %v1631 = vpop.f32.mrf.mxu0
        %1632 = vmatprep.mubr.f32.mxu0 0.0
        %1633 = vmatmul.mubr.f32.gmra.mxu0 %v1387
        %v1634 = vpop.f32.mrf.mxu0
        %v1635 = vadd.f32 %v1521, %v1634
        %v1636 = vpop.f32.mrf.mxu0
        %1637 = vmatprep.mubr.f32.mxu0 0.0
        %1638 = vmatmul.mubr.f32.gmra.mxu0 %v1392
        %v1639 = vpop.f32.mrf.mxu0
        %v1640 = vadd.f32 %v1521, %v1639
        %v1641 = vpop.f32.mrf.mxu0
        %1642 = vmatprep.mubr.f32.mxu0 0.0
        %1643 = vmatmul.mubr.f32.gmra.mxu0 %v1397
        %v1644 = vpop.f32.mrf.mxu0
        %v1645 = vadd.f32 %v1521, %v1644
        %v1646 = vpop.f32.mrf.mxu0
        %1647 = vmatprep.mubr.f32.mxu0 0.0
        %1648 = vmatmul.mubr.f32.gmra.mxu0 %v1402
        %v1649 = vpop.f32.mrf.mxu0
        %v1650 = vadd.f32 %v1521, %v1649
        %v1651 = vpop.f32.mrf.mxu0
        %1652 = vmatprep.mubr.f32.mxu0 0.0
        %1653 = vmatmul.mubr.f32.gmra.mxu0 %v1407
        %v1654 = vpop.f32.mrf.mxu0
        %v1655 = vadd.f32 %v1521, %v1654
        %v1656 = vpop.f32.mrf.mxu0
        %1657 = vmatprep.mubr.f32.mxu0 0.0
        %1658 = vmatmul.mubr.f32.gmra.mxu0 %v1412
        %v1659 = vpop.f32.mrf.mxu0
        %v1660 = vadd.f32 %v1521, %v1659
        %v1661 = vpop.f32.mrf.mxu0
        %1662 = vmatprep.mubr.f32.mxu0 0.0
        %1663 = vmatmul.mubr.f32.gmra.mxu0 %v1417
        %v1664 = vpop.f32.mrf.mxu0
        %v1665 = vadd.f32 %v1521, %v1664
        %v1666 = vpop.f32.mrf.mxu0
        %1667 = vmatprep.mubr.f32.mxu0 0.0
        %1668 = vmatmul.mubr.f32.gmra.mxu0 %v1422
        %v1669 = vpop.f32.mrf.mxu0
        %v1670 = vadd.f32 %v1521, %v1669
        %v1671 = vpop.f32.mrf.mxu0
        %1672 = vmatprep.mubr.f32.mxu0 0.0
        %1673 = vmatmul.mubr.f32.gmra.mxu0 %v1427
        %v1674 = vpop.f32.mrf.mxu0
        %v1675 = vadd.f32 %v1521, %v1674
        %v1676 = vpop.f32.mrf.mxu0
        %1677 = vmatprep.mubr.f32.mxu0 0.0
        %1678 = vmatmul.mubr.f32.gmra.mxu0 %v1432
        %v1679 = vpop.f32.mrf.mxu0
        %v1680 = vadd.f32 %v1521, %v1679
        %v1681 = vpop.f32.mrf.mxu0
        %1682 = vmatprep.mubr.f32.mxu0 0.0
        %1683 = vmatmul.mubr.f32.gmra.mxu0 %v1437
        %v1684 = vpop.f32.mrf.mxu0
        %v1685 = vadd.f32 %v1521, %v1684
        %v1686 = vpop.f32.mrf.mxu0
        %1687 = vmatprep.mubr.f32.mxu0 0.0
        %1688 = vmatmul.mubr.f32.gmra.mxu0 %v1442
        %v1689 = vpop.f32.mrf.mxu0
        %v1690 = vadd.f32 %v1521, %v1689
        %v1691 = vpop.f32.mrf.mxu0
        %1692 = vmatprep.mubr.f32.mxu0 0.0
        %1693 = vmatmul.mubr.f32.gmra.mxu0 %v1447
        %v1694 = vpop.f32.mrf.mxu0
        %v1695 = vadd.f32 %v1521, %v1694
        %v1696 = vpop.f32.mrf.mxu0
        %1697 = vmatprep.mubr.f32.mxu0 0.0
        %1698 = vmatmul.mubr.f32.gmra.mxu0 %v1452
        %v1699 = vpop.f32.mrf.mxu0
        %v1700 = vadd.f32 %v1521, %v1699
        %v1701 = vpop.f32.mrf.mxu0
        %1702 = vmatprep.mubr.f32.mxu0 0.0
        %1703 = vmatmul.mubr.f32.gmra.mxu0 %v1457
        %v1704 = vpop.f32.mrf.mxu0
        %v1705 = vadd.f32 %v1521, %v1704
        %v1706 = vpop.f32.mrf.mxu0
        %1707 = vmatprep.mubr.f32.mxu0 0.0
        %1708 = vmatmul.mubr.f32.gmra.mxu0 %v1462
        %v1709 = vpop.f32.mrf.mxu0
        %v1710 = vadd.f32 %v1521, %v1709
        %v1711 = vpop.f32.mrf.mxu0
        %1712 = vmatprep.mubr.f32.mxu0 0.0
        %1713 = vmatmul.mubr.f32.gmra.mxu0 %v1467
        %v1714 = vpop.f32.mrf.mxu0
        %v1715 = vadd.f32 %v1521, %v1714
        %v1716 = vpop.f32.mrf.mxu0
        %1717 = vmatprep.mubr.f32.mxu0 0.0
        %1718 = vmatmul.mubr.f32.gmra.mxu0 %v1472
        %v1719 = vpop.f32.mrf.mxu0
        %v1720 = vadd.f32 %v1521, %v1719
        %v1721 = vpop.f32.mrf.mxu0
        %1722 = vmatprep.mubr.f32.mxu0 0.0
        %1723 = vmatmul.mubr.f32.gmra.mxu0 %v1477
        %v1724 = vpop.f32.mrf.mxu0
        %v1725 = vadd.f32 %v1521, %v1724
        %v1726 = vpop.f32.mrf.mxu0
        %1727 = vmatprep.mubr.f32.mxu0 0.0
        %1728 = vmatmul.mubr.f32.gmra.mxu0 %v1482
        %v1729 = vpop.f32.mrf.mxu0
        %v1730 = vadd.f32 %v1521, %v1729
        %v1731 = vpop.f32.mrf.mxu0
        %1732 = vmatprep.mubr.f32.mxu0 0.0
        %1733 = vmatmul.mubr.f32.gmra.mxu0 %v1487
        %v1734 = vpop.f32.mrf.mxu0
        %v1735 = vadd.f32 %v1521, %v1734
        %v1736 = vpop.f32.mrf.mxu0
        %1737 = vmatprep.mubr.f32.mxu0 0.0
        %1738 = vmatmul.mubr.f32.gmra.mxu0 %v1492
        %v1739 = vpop.f32.mrf.mxu0
        %v1740 = vadd.f32 %v1521, %v1739
        %v1741 = vpop.f32.mrf.mxu0
        %1742 = vmatprep.mubr.f32.mxu0 0.0
        %1743 = vmatmul.mubr.f32.gmra.mxu0 %v1497
        %v1744 = vpop.f32.mrf.mxu0
        %v1745 = vadd.f32 %v1521, %v1744
        %v1746 = vpop.f32.mrf.mxu0
        %1747 = vdwg.mxu0
        %1748 = vst [vmem:[%s475] sm:$0xff] %v1590
        %1749 = vst [vmem:[%s475 + $0x8] sm:$0xff] %v1595
        %1750 = vst [vmem:[%s475 + $0x10] sm:$0xff] %v1600
        %1751 = vst [vmem:[%s475 + $0x18] sm:$0xff] %v1605
        %1752 = vst [vmem:[%s475 + $0x20] sm:$0xff] %v1610
        %1753 = vst [vmem:[%s475 + $0x28] sm:$0xff] %v1615
        %1754 = vst [vmem:[%s475 + $0x30] sm:$0xff] %v1620
        %1755 = vst [vmem:[%s475 + $0x38] sm:$0xff] %v1625
        %1756 = vst [vmem:[%s475 + $0x40] sm:$0xff] %v1630
        %1757 = vst [vmem:[%s475 + $0x48] sm:$0xff] %v1635
        %1758 = vst [vmem:[%s475 + $0x50] sm:$0xff] %v1640
        %1759 = vst [vmem:[%s475 + $0x58] sm:$0xff] %v1645
        %1760 = vst [vmem:[%s475 + $0x60] sm:$0xff] %v1650
        %1761 = vst [vmem:[%s475 + $0x68] sm:$0xff] %v1655
        %1762 = vst [vmem:[%s475 + $0x70] sm:$0xff] %v1660
        %1763 = vst [vmem:[%s475 + $0x78] sm:$0xff] %v1665
        %1764 = vst [vmem:[%s475 + $0x80] sm:$0xff] %v1670
        %1765 = vst [vmem:[%s475 + $0x88] sm:$0xff] %v1675
        %1766 = vst [vmem:[%s475 + $0x90] sm:$0xff] %v1680
        %1767 = vst [vmem:[%s475 + $0x98] sm:$0xff] %v1685
        %1768 = vst [vmem:[%s475 + $0xa0] sm:$0xff] %v1690
        %1769 = vst [vmem:[%s475 + $0xa8] sm:$0xff] %v1695
        %1770 = vst [vmem:[%s475 + $0xb0] sm:$0xff] %v1700
        %1771 = vst [vmem:[%s475 + $0xb8] sm:$0xff] %v1705
        %1772 = vst [vmem:[%s475 + $0xc0] sm:$0xff] %v1710
        %1773 = vst [vmem:[%s475 + $0xc8] sm:$0xff] %v1715
        %1774 = vst [vmem:[%s475 + $0xd0] sm:$0xff] %v1720
        %1775 = vst [vmem:[%s475 + $0xd8] sm:$0xff] %v1725
        %1776 = vst [vmem:[%s475 + $0xe0] sm:$0xff] %v1730
        %1777 = vst [vmem:[%s475 + $0xe8] sm:$0xff] %v1735
        %1778 = vst [vmem:[%s475 + $0xf0] sm:$0xff] %v1740
        %1779 = vst [vmem:[%s475 + $0xf8] sm:$0xff] %v1745
        %s1780 = sand.u32 %s260, 1
        %s1781 = scalar_lea.sflag [#allocation4], %s1780
        %s1782 = sand.u32 %s260, 1
        %s1783 = smul.addr %s1782, 256
        %s1784 = scalar_lea.vmem [#allocation13], %s1783
        // Predicated region
        $region85: #{tpu_custom_call.1} parent=59 // pred_check
          %p1785 = pneg %p270
        $region86: #{tpu_custom_call.1} parent=59 // pred_check_branch
          %1787 = sbr.rel (%p1785) target = $region88
        $region87: #{tpu_custom_call.1} parent=59 // pred_region
          %s1788 = smul.u32 32, %s32
          %s1790 = ssub.s32 4096, 4096
          %1791 = vsyncadd %s1781, %s1790
          %s1792 = smul.addr %s1788, 128
          %s1793 = scalar_lea.hbm %s10, %s1792
          %s1794 = sshll.u32 %s1784, 4
          %s1795 = int_to_ptr.vmem [resolvable:$true] %s1794
          %1800 = dma.vmem_to_hbm [thread:$0]  %s1795, 4096, %s1793, %s1781, 128, 128, 8
        $region88: #{tpu_custom_call.1} parent=59 // pred_fallthru
          _
      $region60: #{tpu_custom_call.1} parent=5 // pred_fallthru
        _
      %p1801 = scmp.le.s32.totalorder 2, %s27
      // Predicated region
      $region89: #{tpu_custom_call.1} parent=5 // pred_check
        %p1802 = pneg %p1801
      $region90: #{tpu_custom_call.1} parent=5 // pred_check_branch
        %1804 = sbr.rel (%p1802) target = $region92
      $region91: #{tpu_custom_call.1} parent=5 // pred_region
        %s1805 = ssub.s32 %s27, 2
        // Predicated region
        $region93: #{tpu_custom_call.1} parent=91 // pred_check
          %p1806 = pneg %p276
        $region94: #{tpu_custom_call.1} parent=91 // pred_check_branch
          %1808 = sbr.rel (%p1806) target = $region96
        $region95: #{tpu_custom_call.1} parent=91 // pred_region
          %s1809 = sand.u32 %s261, 1
          %s1810 = scalar_lea.sflag [#allocation4], %s1809
          %s1811 = sand.u32 %s261, 1
          %s1812 = smul.addr %s1811, 256
          %s1813 = scalar_lea.vmem [#allocation13], %s1812
          %1814 = dma.done %s1810, 4096
        $region96: #{tpu_custom_call.1} parent=91 // pred_fallthru
          _
      $region92: #{tpu_custom_call.1} parent=5 // pred_fallthru
        _
    $region6: #{tpu_custom_call.1} parent=1 // loop_footer
      %s31 = sadd.s32 1, %s27
    $region7: #{tpu_custom_call.1} parent=1 // loop_footer_branch
      %26 = sbr.rel target = $region3
    $region8: #{tpu_custom_call.1} parent=1 // loop_exit
      _
    %1815 = vsyncpa [#allocation3], 1
    %s1816 = scalar_lea.sflag [#allocation3], 1
    %1817 = vsyncpa %s1816, 1
    %1818 = vsyncpa [#allocation6], 1
    %1819 = vsyncpa [#allocation9], 1
    %1820 = vsyncpa [#allocation12], 1
    %s1821 = scalar_lea.sflag [#allocation12], 1
    %1822 = vsyncpa %s1821, 1
    %1823 = vsyncpa [#allocation4], 1
    %s1824 = scalar_lea.sflag [#allocation4], 1
    %1825 = vsyncpa %s1824, 1

</llo_original>
